<compile_context>
chip_gen: v5e
topology: v5e:2x2
jax: 0.10.0
libtpu: 0.0.40
codegen_flags: <defaults>
</compile_context>

<pallas_src>
import jax
import jax.numpy as jnp
from jax.experimental import pallas as pl
from jax.experimental.pallas import tpu as pltpu


_C1, _C2, _C3, _C4 = 256, 128, 64, 3   # output channels of the 4 deconv layers
_KPAD = 8                               # input channels (3) zero-padded to 8


def _fused_renderer_kernel(x_ref, w1_ref, b1_ref, w2_ref, b2_ref,
                           w3_ref, b3_ref, w4_ref, b4_ref, o_ref):
    """All 4 deconv+ReLU layers for a tile of TM base pixels, VMEM-resident."""
    tm = x_ref.shape[0]

    # Hoisted bias loads (the Python tap loop is unrolled; avoid 4x re-emitted
    # load + broadcast_in_dim, which JAX does not CSE).
    b1 = b1_ref[...]
    b2 = b2_ref[...]
    b3 = b3_ref[...]
    b4 = b4_ref[...]

    # ---- layer 1: ConvTranspose2d(3 -> 256, k=1) + ReLU  (K padded 3 -> 8) ----
    h1 = jnp.dot(x_ref[...], w1_ref[...], preferred_element_type=jnp.float32)
    h1 = jnp.maximum(h1 + b1, 0.0).astype(jnp.bfloat16)                  # (TM, 256)

    # ---- layer 2: ConvTranspose2d(256 -> 128, k=2, s=2), ALL 4 taps in one dot ----
    # N = 512 fills the 256-wide MXU on v6e/v7x; one weight push instead of four.
    h2_all = jnp.dot(h1, w2_ref[...], preferred_element_type=jnp.float32)
    h2_all = jnp.maximum(h2_all + b2, 0.0).astype(jnp.bfloat16)          # (TM, 512)

    # Layers 3-4 per layer-2 tap; each tap's rows go straight into the output block
    # (output rows = (tap2, pixel)).
    for t2 in range(4):
        h2 = h2_all[:, t2 * _C2:(t2 + 1) * _C2]        # 128-lane-aligned free view

        # ---- layer 3: all 4 tap3 chunks in one matmul (cols = (t3, c3)) ----
        h3 = jnp.dot(h2, w3_ref[...], preferred_element_type=jnp.float32)
        h3 = jnp.maximum(h3 + b3, 0.0).astype(jnp.bfloat16)              # (TM, 256)

        # ---- layer 4: block-diagonal over t3, cols = (t3, t4, c) ----
        h4 = jnp.dot(h3, w4_ref[...], preferred_element_type=jnp.float32)
        h4 = jnp.maximum(h4 + b4, 0.0)                                   # (TM, 48)

        o_ref[t2 * tm:(t2 + 1) * tm, :] = h4.astype(o_ref.dtype)


def _prep_weights(params):
    """Torch ConvTranspose2d layouts -> matmul layouts (bf16 weights, f32 biases)."""
    w1 = params["w1"][:, :, 0, 0]                                        # (3, 256)
    w1p = jnp.zeros((_KPAD, _C1), jnp.float32).at[:3].set(w1)            # K pad 3->8
    # (in, out, kH, kW) -> (in, kH, kW, out) -> (in, taps*out), channel fastest
    w2s = jnp.transpose(params["w2"], (0, 2, 3, 1)).reshape(_C1, 4 * _C2)
    w3s = jnp.transpose(params["w3"], (0, 2, 3, 1)).reshape(_C2, 4 * _C3)
    w4s = jnp.transpose(params["w4"], (0, 2, 3, 1)).reshape(_C3, 4 * _C4)
    # block-diagonal over tap3 so layer 4 handles all 4 tap3 chunks in one matmul
    w4bd = jnp.einsum("ab,ij->aibj", jnp.eye(4, dtype=jnp.float32), w4s)
    w4bd = w4bd.reshape(4 * _C3, 16 * _C4)                               # (256, 48)

    b1 = params["b1"].reshape(1, _C1)
    b2 = jnp.tile(params["b2"], 4).reshape(1, 4 * _C2)                   # tiled for wide L2
    b3 = jnp.tile(params["b3"], 4).reshape(1, 4 * _C3)
    b4 = jnp.tile(params["b4"], 16).reshape(1, 16 * _C4)
    cast = lambda a: a.astype(jnp.bfloat16)
    return cast(w1p), b1, cast(w2s), b2, cast(w3s), b3, cast(w4bd), b4


def _default_max_tm():
    """Generation-aware tile cap: ~2048 on 128-MiB-VMEM parts, 1024 on v7x (64 MiB)."""
    try:
        cap = pltpu.get_tpu_info().vmem_capacity_bytes
    except Exception:
        cap = 64 * 1024 * 1024
    return 2048 if cap >= (100 << 20) else 1024


_MAX_TM = _default_max_tm()
_VMEM_LIMIT = (64 << 20) if _MAX_TM >= 2048 else (32 << 20)


def _tile_rows(m, max_tm):
    """Row tile over base pixels: big tiles, >=2 grid steps, even step count (v7x)."""
    tm = min(max_tm, pl.cdiv(m, 2))
    tm = max(16, (tm // 16) * 16)        # bf16 sublane packing / (8,128) block rule
    steps = pl.cdiv(m, tm)
    if steps > 1 and steps % 2:
        steps += 1                       # balance the two v7x TensorCores
    return tm, steps


def vgg_renderer_forward(x_nchw, params):
    """Forward pass of VGG_renderer (NCHW in / NCHW out), one fused Pallas call."""
    n, cin, h, w = x_nchw.shape
    assert cin == 3
    m = n * h * w

    w1p, b1, w2s, b2, w3s, b3, w4bd, b4 = _prep_weights(params)

    # base pixels as rows; zero-pad rows to a tile multiple and channels 3 -> 8
    x_rows = jnp.transpose(x_nchw, (0, 2, 3, 1)).reshape(m, 3)
    tm, steps = _tile_rows(m, _MAX_TM)
    m_pad = tm * steps
    x_pad = jnp.zeros((m_pad, _KPAD), jnp.bfloat16).at[:m, :3].set(
        x_rows.astype(jnp.bfloat16))

    # Weights/biases use constant index maps (no re-DMA across grid steps);
    # total ~0.35 MiB bf16, negligible in VMEM on all generations.
    out = pl.pallas_call(
        _fused_renderer_kernel,
        out_shape=jax.ShapeDtypeStruct((4 * m_pad, 16 * _C4), jnp.float32),
        grid_spec=pltpu.PrefetchScalarGridSpec(
            num_scalar_prefetch=0,
            grid=(steps,),
            in_specs=[
                pl.BlockSpec((tm, _KPAD), lambda i: (i, 0)),
                pl.BlockSpec((_KPAD, _C1), lambda i: (0, 0)),
                pl.BlockSpec((1, _C1), lambda i: (0, 0)),
                pl.BlockSpec((_C1, 4 * _C2), lambda i: (0, 0)),
                pl.BlockSpec((1, 4 * _C2), lambda i: (0, 0)),
                pl.BlockSpec((_C2, 4 * _C3), lambda i: (0, 0)),
                pl.BlockSpec((1, 4 * _C3), lambda i: (0, 0)),
                pl.BlockSpec((4 * _C3, 16 * _C4), lambda i: (0, 0)),
                pl.BlockSpec((1, 16 * _C4), lambda i: (0, 0)),
            ],
            out_specs=pl.BlockSpec((4 * tm, 16 * _C4), lambda i: (i, 0)),
        ),
        compiler_params=pltpu.CompilerParams(
            dimension_semantics=("parallel",),
            vmem_limit_bytes=_VMEM_LIMIT,
        ),
    )(x_pad, w1p, b1, w2s, b2, w3s, b3, w4bd, b4)

    # Final tap interleave (layout glue on the final output; see TODO at top).
    # out rows = (tile, a2, b2, p), cols = (a3, b3, a4, b4, c).
    y = out.reshape(steps, 2, 2, tm, 2, 2, 2, 2, 3)
    y = jnp.transpose(y, (0, 3, 8, 1, 4, 6, 2, 5, 7))      # [T,p,c,a2,a3,a4,b2,b3,b4]
    y = y.reshape(m_pad, 3, 2, 2, 2, 2, 2, 2)[:m]          # drop row padding
    y = y.reshape(n, h, w, 3, 2, 2, 2, 2, 2, 2)            # [n,i,j,c,a2,a3,a4,b2,b3,b4]
    y = jnp.transpose(y, (0, 3, 1, 4, 5, 6, 2, 7, 8, 9))   # [n,c,i,a2,a3,a4,j,b2,b3,b4]
    return y.reshape(n, 3, 8 * h, 8 * w)


def _reference_forward(x, params):
    """Pure-JAX f32 reference (same ConvTranspose2d semantics), for a sanity check."""
    def deconv2x2(hh, wgt, bias):        # hh: (N,Cin,H,W); wgt: (Cin,Cout,2,2)
        y = jnp.einsum("nchw,cdab->ndhawb", hh, wgt)       # (N,Cout,H,2,W,2)
        nb, d, hh_, _, ww_, _ = y.shape
        y = y.reshape(nb, d, 2 * hh_, 2 * ww_) + bias[None, :, None, None]
        return jnp.maximum(y, 0.0)
    hh = jnp.einsum("nchw,cd->ndhw", x, params["w1"][:, :, 0, 0])
    hh = jnp.maximum(hh + params["b1"][None, :, None, None], 0.0)
    hh = deconv2x2(hh, params["w2"], params["b2"])
    hh = deconv2x2(hh, params["w3"], params["b3"])
    hh = deconv2x2(hh, params["w4"], params["b4"])
    return hh


def init_params(key):
    """Deterministic synthetic params; torch ConvTranspose2d layout (in,out,kH,kW)."""
    ks = jax.random.split(key, 8)
    def wi(k, shape, fan_in):
        return jax.random.normal(k, shape, jnp.float32) * (1.0 / jnp.sqrt(fan_in))
    return {
        "w1": wi(ks[0], (3, 256, 1, 1), 3),
        "b1": wi(ks[1], (256,), 3),
        "w2": wi(ks[2], (256, 128, 2, 2), 256 * 4),
        "b2": wi(ks[3], (128,), 256),
        "w3": wi(ks[4], (128, 64, 2, 2), 128 * 4),
        "b3": wi(ks[5], (64,), 128),
        "w4": wi(ks[6], (64, 3, 2, 2), 64 * 4),
        "b4": wi(ks[7], (3,), 64),
    }


if __name__ == "__main__":
    key = jax.random.PRNGKey(0)
    k_x, k_p = jax.random.split(key)

    N, C, H, W = 2, 3, 8, 8
    x = jax.random.normal(k_x, (N, C, H, W), jnp.float32)
    params = init_params(k_p)

    out = jax.jit(vgg_renderer_forward)(x, params)
    out = jax.block_until_ready(out)

    assert out.shape == (N, 3, 8 * H, 8 * W), out.shape
    assert out.dtype == jnp.float32
    assert bool(jnp.all(out >= 0.0))   # final ReLU

    # Loose-tolerance check vs. pure-JAX f32 reference (kernel uses bf16 weights/acts).
    ref = _reference_forward(x, params)
    err = float(jnp.max(jnp.abs(out - ref)))
    tol = 5e-2 * float(jnp.max(jnp.abs(ref))) + 1e-2
    assert err <= tol, (err, tol)

    print("KERNEL_OK")
</pallas_src>

<mosaic_0001>
module attributes {stable_mosaic.version = 11 : i64} {
  func.func @_fused_renderer_kernel(%arg0: i32, %arg1: memref<64x8xbf16, #tpu.memory_space<vmem>>, %arg2: memref<8x256xbf16, #tpu.memory_space<vmem>>, %arg3: memref<1x256xf32, #tpu.memory_space<vmem>>, %arg4: memref<256x512xbf16, #tpu.memory_space<vmem>>, %arg5: memref<1x512xf32, #tpu.memory_space<vmem>>, %arg6: memref<128x256xbf16, #tpu.memory_space<vmem>>, %arg7: memref<1x256xf32, #tpu.memory_space<vmem>>, %arg8: memref<256x48xbf16, #tpu.memory_space<vmem>>, %arg9: memref<1x48xf32, #tpu.memory_space<vmem>>, %arg10: memref<256x48xf32, #tpu.memory_space<vmem>>) attributes {dimension_semantics = [#tpu.dimension_semantics<parallel>], iteration_bounds = array<i64: 2>, scalar_prefetch = 0 : i64, scratch_operands = 0 : i64, tpu.core_type = #tpu.core_type<tc>, window_params = [{transform_indices = @transform_0, window_bounds = array<i64: 64, 8>}, {pipeline_mode = #tpu.pipeline_mode<synchronous>, transform_indices = @transform_1, window_bounds = array<i64: 8, 256>}, {pipeline_mode = #tpu.pipeline_mode<synchronous>, transform_indices = @transform_2, window_bounds = array<i64: 1, 256>}, {pipeline_mode = #tpu.pipeline_mode<synchronous>, transform_indices = @transform_3, window_bounds = array<i64: 256, 512>}, {pipeline_mode = #tpu.pipeline_mode<synchronous>, transform_indices = @transform_4, window_bounds = array<i64: 1, 512>}, {pipeline_mode = #tpu.pipeline_mode<synchronous>, transform_indices = @transform_5, window_bounds = array<i64: 128, 256>}, {pipeline_mode = #tpu.pipeline_mode<synchronous>, transform_indices = @transform_6, window_bounds = array<i64: 1, 256>}, {pipeline_mode = #tpu.pipeline_mode<synchronous>, transform_indices = @transform_7, window_bounds = array<i64: 256, 48>}, {pipeline_mode = #tpu.pipeline_mode<synchronous>, transform_indices = @transform_8, window_bounds = array<i64: 1, 48>}, {transform_indices = @transform_9, window_bounds = array<i64: 256, 48>}]} {
    %c0 = arith.constant 0 : index
    %c0_0 = arith.constant 0 : index
    %0 = vector.load %arg3[%c0, %c0_0] : memref<1x256xf32, #tpu.memory_space<vmem>>, vector<1x256xf32>
    %c0_1 = arith.constant 0 : index
    %c0_2 = arith.constant 0 : index
    %1 = vector.load %arg5[%c0_1, %c0_2] : memref<1x512xf32, #tpu.memory_space<vmem>>, vector<1x512xf32>
    %c0_3 = arith.constant 0 : index
    %c0_4 = arith.constant 0 : index
    %2 = vector.load %arg7[%c0_3, %c0_4] : memref<1x256xf32, #tpu.memory_space<vmem>>, vector<1x256xf32>
    %c0_5 = arith.constant 0 : index
    %c0_6 = arith.constant 0 : index
    %3 = vector.load %arg9[%c0_5, %c0_6] : memref<1x48xf32, #tpu.memory_space<vmem>>, vector<1x48xf32>
    %c0_7 = arith.constant 0 : index
    %c0_8 = arith.constant 0 : index
    %4 = vector.load %arg1[%c0_7, %c0_8] : memref<64x8xbf16, #tpu.memory_space<vmem>>, vector<64x8xbf16>
    %c0_9 = arith.constant 0 : index
    %c0_10 = arith.constant 0 : index
    %5 = vector.load %arg2[%c0_9, %c0_10] : memref<8x256xbf16, #tpu.memory_space<vmem>>, vector<8x256xbf16>
    %cst = arith.constant dense<0.000000e+00> : vector<64x256xf32>
    %6 = tpu.matmul %4, %5, %cst {dimension_numbers = #tpu.dot_dimension_numbers<[1], [0], [0], [1], [0, 0, 1, 1], [], []>} : vector<64x8xbf16>, vector<8x256xbf16>, vector<64x256xf32> -> vector<64x256xf32>
    %7 = vector.broadcast %0 : vector<1x256xf32> to vector<64x256xf32>
    %8 = arith.addf %6, %7 : vector<64x256xf32>
    %cst_11 = arith.constant 0.000000e+00 : f32
    %9 = vector.broadcast %cst_11 : f32 to vector<64x256xf32>
    %10 = arith.maximumf %8, %9 : vector<64x256xf32>
    %11 = arith.truncf %10 : vector<64x256xf32> to vector<64x256xbf16>
    %c0_12 = arith.constant 0 : index
    %c0_13 = arith.constant 0 : index
    %12 = vector.load %arg4[%c0_12, %c0_13] : memref<256x512xbf16, #tpu.memory_space<vmem>>, vector<256x512xbf16>
    %cst_14 = arith.constant dense<0.000000e+00> : vector<64x512xf32>
    %13 = tpu.matmul %11, %12, %cst_14 {dimension_numbers = #tpu.dot_dimension_numbers<[1], [0], [0], [1], [0, 0, 1, 1], [], []>} : vector<64x256xbf16>, vector<256x512xbf16>, vector<64x512xf32> -> vector<64x512xf32>
    %14 = vector.broadcast %1 : vector<1x512xf32> to vector<64x512xf32>
    %15 = arith.addf %13, %14 : vector<64x512xf32>
    %cst_15 = arith.constant 0.000000e+00 : f32
    %16 = vector.broadcast %cst_15 : f32 to vector<64x512xf32>
    %17 = arith.maximumf %15, %16 : vector<64x512xf32>
    %18 = arith.truncf %17 : vector<64x512xf32> to vector<64x512xbf16>
    %19 = vector.extract_strided_slice %18 {offsets = [0, 0], sizes = [64, 128], strides = [1, 1]} : vector<64x512xbf16> to vector<64x128xbf16>
    %c0_16 = arith.constant 0 : index
    %c0_17 = arith.constant 0 : index
    %20 = vector.load %arg6[%c0_16, %c0_17] : memref<128x256xbf16, #tpu.memory_space<vmem>>, vector<128x256xbf16>
    %cst_18 = arith.constant dense<0.000000e+00> : vector<64x256xf32>
    %21 = tpu.matmul %19, %20, %cst_18 {dimension_numbers = #tpu.dot_dimension_numbers<[1], [0], [0], [1], [0, 0, 1, 1], [], []>} : vector<64x128xbf16>, vector<128x256xbf16>, vector<64x256xf32> -> vector<64x256xf32>
    %22 = vector.broadcast %2 : vector<1x256xf32> to vector<64x256xf32>
    %23 = arith.addf %21, %22 : vector<64x256xf32>
    %cst_19 = arith.constant 0.000000e+00 : f32
    %24 = vector.broadcast %cst_19 : f32 to vector<64x256xf32>
    %25 = arith.maximumf %23, %24 : vector<64x256xf32>
    %26 = arith.truncf %25 : vector<64x256xf32> to vector<64x256xbf16>
    %c0_20 = arith.constant 0 : index
    %c0_21 = arith.constant 0 : index
    %27 = vector.load %arg8[%c0_20, %c0_21] : memref<256x48xbf16, #tpu.memory_space<vmem>>, vector<256x48xbf16>
    %cst_22 = arith.constant dense<0.000000e+00> : vector<64x48xf32>
    %28 = tpu.matmul %26, %27, %cst_22 {dimension_numbers = #tpu.dot_dimension_numbers<[1], [0], [0], [1], [0, 0, 1, 1], [], []>} : vector<64x256xbf16>, vector<256x48xbf16>, vector<64x48xf32> -> vector<64x48xf32>
    %29 = vector.broadcast %3 : vector<1x48xf32> to vector<64x48xf32>
    %30 = arith.addf %28, %29 : vector<64x48xf32>
    %cst_23 = arith.constant 0.000000e+00 : f32
    %31 = vector.broadcast %cst_23 : f32 to vector<64x48xf32>
    %32 = arith.maximumf %30, %31 : vector<64x48xf32>
    %c0_24 = arith.constant 0 : index
    %c0_25 = arith.constant 0 : index
    %33 = vector.load %arg10[%c0_24, %c0_25] : memref<256x48xf32, #tpu.memory_space<vmem>>, vector<64x48xf32>
    tpu.vector_store %arg10[%c0_24, %c0_25], %32 {strides = array<i32>} : memref<256x48xf32, #tpu.memory_space<vmem>>, vector<64x48xf32>,
    %34 = vector.extract_strided_slice %18 {offsets = [0, 128], sizes = [64, 128], strides = [1, 1]} : vector<64x512xbf16> to vector<64x128xbf16>
    %c0_26 = arith.constant 0 : index
    %c0_27 = arith.constant 0 : index
    %35 = vector.load %arg6[%c0_26, %c0_27] : memref<128x256xbf16, #tpu.memory_space<vmem>>, vector<128x256xbf16>
    %cst_28 = arith.constant dense<0.000000e+00> : vector<64x256xf32>
    %36 = tpu.matmul %34, %35, %cst_28 {dimension_numbers = #tpu.dot_dimension_numbers<[1], [0], [0], [1], [0, 0, 1, 1], [], []>} : vector<64x128xbf16>, vector<128x256xbf16>, vector<64x256xf32> -> vector<64x256xf32>
    %37 = vector.broadcast %2 : vector<1x256xf32> to vector<64x256xf32>
    %38 = arith.addf %36, %37 : vector<64x256xf32>
    %cst_29 = arith.constant 0.000000e+00 : f32
    %39 = vector.broadcast %cst_29 : f32 to vector<64x256xf32>
    %40 = arith.maximumf %38, %39 : vector<64x256xf32>
    %41 = arith.truncf %40 : vector<64x256xf32> to vector<64x256xbf16>
    %c0_30 = arith.constant 0 : index
    %c0_31 = arith.constant 0 : index
    %42 = vector.load %arg8[%c0_30, %c0_31] : memref<256x48xbf16, #tpu.memory_space<vmem>>, vector<256x48xbf16>
    %cst_32 = arith.constant dense<0.000000e+00> : vector<64x48xf32>
    %43 = tpu.matmul %41, %42, %cst_32 {dimension_numbers = #tpu.dot_dimension_numbers<[1], [0], [0], [1], [0, 0, 1, 1], [], []>} : vector<64x256xbf16>, vector<256x48xbf16>, vector<64x48xf32> -> vector<64x48xf32>
    %44 = vector.broadcast %3 : vector<1x48xf32> to vector<64x48xf32>
    %45 = arith.addf %43, %44 : vector<64x48xf32>
    %cst_33 = arith.constant 0.000000e+00 : f32
    %46 = vector.broadcast %cst_33 : f32 to vector<64x48xf32>
    %47 = arith.maximumf %45, %46 : vector<64x48xf32>
    %c64 = arith.constant 64 : index
    %c0_34 = arith.constant 0 : index
    %48 = vector.load %arg10[%c64, %c0_34] : memref<256x48xf32, #tpu.memory_space<vmem>>, vector<64x48xf32>
    tpu.vector_store %arg10[%c64, %c0_34], %47 {strides = array<i32>} : memref<256x48xf32, #tpu.memory_space<vmem>>, vector<64x48xf32>,
    %49 = vector.extract_strided_slice %18 {offsets = [0, 256], sizes = [64, 128], strides = [1, 1]} : vector<64x512xbf16> to vector<64x128xbf16>
    %c0_35 = arith.constant 0 : index
    %c0_36 = arith.constant 0 : index
    %50 = vector.load %arg6[%c0_35, %c0_36] : memref<128x256xbf16, #tpu.memory_space<vmem>>, vector<128x256xbf16>
    %cst_37 = arith.constant dense<0.000000e+00> : vector<64x256xf32>
    %51 = tpu.matmul %49, %50, %cst_37 {dimension_numbers = #tpu.dot_dimension_numbers<[1], [0], [0], [1], [0, 0, 1, 1], [], []>} : vector<64x128xbf16>, vector<128x256xbf16>, vector<64x256xf32> -> vector<64x256xf32>
    %52 = vector.broadcast %2 : vector<1x256xf32> to vector<64x256xf32>
    %53 = arith.addf %51, %52 : vector<64x256xf32>
    %cst_38 = arith.constant 0.000000e+00 : f32
    %54 = vector.broadcast %cst_38 : f32 to vector<64x256xf32>
    %55 = arith.maximumf %53, %54 : vector<64x256xf32>
    %56 = arith.truncf %55 : vector<64x256xf32> to vector<64x256xbf16>
    %c0_39 = arith.constant 0 : index
    %c0_40 = arith.constant 0 : index
    %57 = vector.load %arg8[%c0_39, %c0_40] : memref<256x48xbf16, #tpu.memory_space<vmem>>, vector<256x48xbf16>
    %cst_41 = arith.constant dense<0.000000e+00> : vector<64x48xf32>
    %58 = tpu.matmul %56, %57, %cst_41 {dimension_numbers = #tpu.dot_dimension_numbers<[1], [0], [0], [1], [0, 0, 1, 1], [], []>} : vector<64x256xbf16>, vector<256x48xbf16>, vector<64x48xf32> -> vector<64x48xf32>
    %59 = vector.broadcast %3 : vector<1x48xf32> to vector<64x48xf32>
    %60 = arith.addf %58, %59 : vector<64x48xf32>
    %cst_42 = arith.constant 0.000000e+00 : f32
    %61 = vector.broadcast %cst_42 : f32 to vector<64x48xf32>
    %62 = arith.maximumf %60, %61 : vector<64x48xf32>
    %c128 = arith.constant 128 : index
    %c0_43 = arith.constant 0 : index
    %63 = vector.load %arg10[%c128, %c0_43] : memref<256x48xf32, #tpu.memory_space<vmem>>, vector<64x48xf32>
    tpu.vector_store %arg10[%c128, %c0_43], %62 {strides = array<i32>} : memref<256x48xf32, #tpu.memory_space<vmem>>, vector<64x48xf32>,
    %64 = vector.extract_strided_slice %18 {offsets = [0, 384], sizes = [64, 128], strides = [1, 1]} : vector<64x512xbf16> to vector<64x128xbf16>
    %c0_44 = arith.constant 0 : index
    %c0_45 = arith.constant 0 : index
    %65 = vector.load %arg6[%c0_44, %c0_45] : memref<128x256xbf16, #tpu.memory_space<vmem>>, vector<128x256xbf16>
    %cst_46 = arith.constant dense<0.000000e+00> : vector<64x256xf32>
    %66 = tpu.matmul %64, %65, %cst_46 {dimension_numbers = #tpu.dot_dimension_numbers<[1], [0], [0], [1], [0, 0, 1, 1], [], []>} : vector<64x128xbf16>, vector<128x256xbf16>, vector<64x256xf32> -> vector<64x256xf32>
    %67 = vector.broadcast %2 : vector<1x256xf32> to vector<64x256xf32>
    %68 = arith.addf %66, %67 : vector<64x256xf32>
    %cst_47 = arith.constant 0.000000e+00 : f32
    %69 = vector.broadcast %cst_47 : f32 to vector<64x256xf32>
    %70 = arith.maximumf %68, %69 : vector<64x256xf32>
    %71 = arith.truncf %70 : vector<64x256xf32> to vector<64x256xbf16>
    %c0_48 = arith.constant 0 : index
    %c0_49 = arith.constant 0 : index
    %72 = vector.load %arg8[%c0_48, %c0_49] : memref<256x48xbf16, #tpu.memory_space<vmem>>, vector<256x48xbf16>
    %cst_50 = arith.constant dense<0.000000e+00> : vector<64x48xf32>
    %73 = tpu.matmul %71, %72, %cst_50 {dimension_numbers = #tpu.dot_dimension_numbers<[1], [0], [0], [1], [0, 0, 1, 1], [], []>} : vector<64x256xbf16>, vector<256x48xbf16>, vector<64x48xf32> -> vector<64x48xf32>
    %74 = vector.broadcast %3 : vector<1x48xf32> to vector<64x48xf32>
    %75 = arith.addf %73, %74 : vector<64x48xf32>
    %cst_51 = arith.constant 0.000000e+00 : f32
    %76 = vector.broadcast %cst_51 : f32 to vector<64x48xf32>
    %77 = arith.maximumf %75, %76 : vector<64x48xf32>
    %c192 = arith.constant 192 : index
    %c0_52 = arith.constant 0 : index
    %78 = vector.load %arg10[%c192, %c0_52] : memref<256x48xf32, #tpu.memory_space<vmem>>, vector<64x48xf32>
    tpu.vector_store %arg10[%c192, %c0_52], %77 {strides = array<i32>} : memref<256x48xf32, #tpu.memory_space<vmem>>, vector<64x48xf32>,
    return
  }
  func.func @transform_0(%arg0: i32) -> (i32, i32) {
    %c0_i32 = arith.constant 0 : i32
    %c0_i32_0 = arith.constant 0 : i32
    return %arg0, %c0_i32 : i32, i32
  }
  func.func @transform_1(%arg0: i32) -> (i32, i32) {
    %c0_i32 = arith.constant 0 : i32
    %c0_i32_0 = arith.constant 0 : i32
    %c0_i32_1 = arith.constant 0 : i32
    return %c0_i32, %c0_i32_0 : i32, i32
  }
  func.func @transform_2(%arg0: i32) -> (i32, i32) {
    %c0_i32 = arith.constant 0 : i32
    %c0_i32_0 = arith.constant 0 : i32
    %c0_i32_1 = arith.constant 0 : i32
    return %c0_i32, %c0_i32_0 : i32, i32
  }
  func.func @transform_3(%arg0: i32) -> (i32, i32) {
    %c0_i32 = arith.constant 0 : i32
    %c0_i32_0 = arith.constant 0 : i32
    %c0_i32_1 = arith.constant 0 : i32
    return %c0_i32, %c0_i32_0 : i32, i32
  }
  func.func @transform_4(%arg0: i32) -> (i32, i32) {
    %c0_i32 = arith.constant 0 : i32
    %c0_i32_0 = arith.constant 0 : i32
    %c0_i32_1 = arith.constant 0 : i32
    return %c0_i32, %c0_i32_0 : i32, i32
  }
  func.func @transform_5(%arg0: i32) -> (i32, i32) {
    %c0_i32 = arith.constant 0 : i32
    %c0_i32_0 = arith.constant 0 : i32
    %c0_i32_1 = arith.constant 0 : i32
    return %c0_i32, %c0_i32_0 : i32, i32
  }
  func.func @transform_6(%arg0: i32) -> (i32, i32) {
    %c0_i32 = arith.constant 0 : i32
    %c0_i32_0 = arith.constant 0 : i32
    %c0_i32_1 = arith.constant 0 : i32
    return %c0_i32, %c0_i32_0 : i32, i32
  }
  func.func @transform_7(%arg0: i32) -> (i32, i32) {
    %c0_i32 = arith.constant 0 : i32
    %c0_i32_0 = arith.constant 0 : i32
    %c0_i32_1 = arith.constant 0 : i32
    return %c0_i32, %c0_i32_0 : i32, i32
  }
  func.func @transform_8(%arg0: i32) -> (i32, i32) {
    %c0_i32 = arith.constant 0 : i32
    %c0_i32_0 = arith.constant 0 : i32
    %c0_i32_1 = arith.constant 0 : i32
    return %c0_i32, %c0_i32_0 : i32, i32
  }
  func.func @transform_9(%arg0: i32) -> (i32, i32) {
    %c0_i32 = arith.constant 0 : i32
    %c0_i32_0 = arith.constant 0 : i32
    return %arg0, %c0_i32 : i32, i32
  }
}

</mosaic_0001>

<llo_original>
// kernel: tile.24
$region0: #{tile.24}
  %s0 = inlined_call_operand.vmem [shape: f32[4,64], index: 0, kind: input, shape index: {}]
  %s1 = inlined_call_operand.vmem [shape: f32[1,256], index: 1, kind: output, shape index: {}]
  $region1: #{tile.24} parent=0
    #allocation0 [shape = 'u8[8192]{0}', space=vmem, size = 0x2000, scoped, tag = 'scoped mem for output reshape']
    #allocation1 [shape = 'u8[4096]{0}', space=vmem, size = 0x1000, scoped, tag = 'scoped mem for input reshape']
    %s3 = ssub.s32 16, 1
    %v4 = vld [vmem:[%s0] sm:%s3]
    %5 = vst [vmem:[#allocation1] sm:%s3] %v4
    %s6 = smov 3
    %v7 = vld [vmem:[#allocation1] ss:$2 sm:%s6]
    %vm8 = vcmask 523264
    %9 = vst.msk [vmem:[#allocation0] ss:$8 sm:$0x3] %vm8, %v7
    %s10 = scalar_lea.vmem [#allocation1], 1
    %s11 = smov 3
    %v12 = vld [vmem:[%s10] ss:$2 sm:%s11]
    %13 = vrot.lane.b32.xlu0 %v12, 64
    %v14 = vpop.permute.xlu0 %13
    %vm15 = vcmask 1048064
    %16 = vst.msk [vmem:[#allocation0] ss:$8 sm:$0x3] %vm15, %v14
    %s18 = ssub.s32 2, 1
    %v19 = vld [vmem:[#allocation0] sm:%s18]
    %s21 = ssub.s32 2, 1
    %22 = vst [vmem:[%s1] sm:%s21] %v19
    %s23 = scalar_lea.vmem [#allocation0], 8
    %v24 = vld [vmem:[%s23] sm:%s18]
    %s26 = ssub.s32 2, 1
    %s27 = scalar_lea.vmem %s1, 1
    %28 = vst [vmem:[%s27] sm:%s26] %v24

// kernel: tile.18
$region0: #{tile.18}
  #allocation2 [shape = 's32[1]{0}', space=sflag, size = 0x4, scoped, tag = 'scoped memory for tile.18']
  %s0 = inlined_call_operand.hbm [shape: f32[128], index: 0, kind: input, shape index: {}]
  %s1 = inlined_call_operand.vmem [shape: f32[4,128], index: 1, kind: output, shape index: {}]
  $region1: #{tile.18} parent=0
    #allocation0 [shape = 'u8[512]{0}', space=vmem, size = 0x400, scoped, tag = 'operand span for operand 0']
    #allocation1 [shape = 's32[1]{0}', space=sflag, size = 0x4, scoped, tag = 'scoped memory for tile.18']
    %2 = vsyncpa [#allocation1], 0
    // Predicated region
    $region2: #{tile.18} parent=1 // pred_check
      _
    $region3: #{tile.18} parent=1 // pred_check_branch
      %4 = sbr.rel (0) target = $region5
    $region4: #{tile.18} parent=1 // pred_region
      %6 = vsyncadd [#allocation1], 0
      %s8 = sshll.u32 %s0, 4
      %s9 = int_to_ptr.hbm [resolvable:$true] %s8
      %s10 = sshll.u32 [#allocation0], 4
      %s11 = int_to_ptr.vmem [resolvable:$true] %s10
      %13 = dma.hbm_to_vmem [thread:$0]  %s9, 16, %s11, [#allocation1]
    $region5: #{tile.18} parent=1 // pred_fallthru
      _
    // Predicated region
    $region6: #{tile.18} parent=1 // pred_check
      _
    $region7: #{tile.18} parent=1 // pred_check_branch
      %15 = sbr.rel (0) target = $region9
    $region8: #{tile.18} parent=1 // pred_region
      %17 = dma.done [#allocation1], 16
    $region9: #{tile.18} parent=1 // pred_fallthru
      _
    %v18 = vld [vmem:[#allocation0] ss:$0 sm:$0xff]
    %19 = vst [vmem:[%s1] sm:$0xf] %v18
    %20 = vsyncpa [#allocation1], 1

// kernel: tile.23
$region0: #{tile.23}
  #allocation2 [shape = 's32[1]{0}', space=sflag, size = 0x4, scoped, tag = 'scoped memory for tile.23']
  %s0 = inlined_call_operand.hbm [shape: f32[64], index: 0, kind: input, shape index: {}]
  %s1 = inlined_call_operand.vmem [shape: f32[4,64], index: 1, kind: output, shape index: {}]
  $region1: #{tile.23} parent=0
    #allocation0 [shape = 'u8[512]{0}', space=vmem, size = 0x400, scoped, tag = 'operand span for operand 0']
    #allocation1 [shape = 's32[1]{0}', space=sflag, size = 0x4, scoped, tag = 'scoped memory for tile.23']
    %2 = vsyncpa [#allocation1], 0
    // Predicated region
    $region2: #{tile.23} parent=1 // pred_check
      _
    $region3: #{tile.23} parent=1 // pred_check_branch
      %4 = sbr.rel (0) target = $region5
    $region4: #{tile.23} parent=1 // pred_region
      %6 = vsyncadd [#allocation1], 0
      %s8 = sshll.u32 %s0, 4
      %s9 = int_to_ptr.hbm [resolvable:$true] %s8
      %s10 = sshll.u32 [#allocation0], 4
      %s11 = int_to_ptr.vmem [resolvable:$true] %s10
      %13 = dma.hbm_to_vmem [thread:$0]  %s9, 16, %s11, [#allocation1]
    $region5: #{tile.23} parent=1 // pred_fallthru
      _
    // Predicated region
    $region6: #{tile.23} parent=1 // pred_check
      _
    $region7: #{tile.23} parent=1 // pred_check_branch
      %15 = sbr.rel (0) target = $region9
    $region8: #{tile.23} parent=1 // pred_region
      %17 = dma.done [#allocation1], 16
    $region9: #{tile.23} parent=1 // pred_fallthru
      _
    %v18 = vld [vmem:[#allocation0] ss:$0 sm:$0xff]
    %19 = vst [vmem:[%s1] sm:$0xf] %v18
    %20 = vsyncpa [#allocation1], 1

// kernel: tile.28
$region0: #{tile.28}
  #allocation2 [shape = 's32[1]{0}', space=sflag, size = 0x4, scoped, tag = 'scoped memory for tile.28']
  %s0 = inlined_call_operand.hbm [shape: f32[3], index: 0, kind: input, shape index: {}]
  %s1 = inlined_call_operand.vmem [shape: f32[16,3], index: 1, kind: output, shape index: {}]
  $region1: #{tile.28} parent=0
    #allocation0 [shape = 'u8[512]{0}', space=vmem, size = 0x400, scoped, tag = 'operand span for operand 0']
    #allocation1 [shape = 's32[1]{0}', space=sflag, size = 0x4, scoped, tag = 'scoped memory for tile.28']
    %2 = vsyncpa [#allocation1], 0
    // Predicated region
    $region2: #{tile.28} parent=1 // pred_check
      _
    $region3: #{tile.28} parent=1 // pred_check_branch
      %4 = sbr.rel (0) target = $region5
    $region4: #{tile.28} parent=1 // pred_region
      %6 = vsyncadd [#allocation1], 0
      %s8 = sshll.u32 %s0, 4
      %s9 = int_to_ptr.hbm [resolvable:$true] %s8
      %s10 = sshll.u32 [#allocation0], 4
      %s11 = int_to_ptr.vmem [resolvable:$true] %s10
      %13 = dma.hbm_to_vmem [thread:$0]  %s9, 16, %s11, [#allocation1]
    $region5: #{tile.28} parent=1 // pred_fallthru
      _
    // Predicated region
    $region6: #{tile.28} parent=1 // pred_check
      _
    $region7: #{tile.28} parent=1 // pred_check_branch
      %15 = sbr.rel (0) target = $region9
    $region8: #{tile.28} parent=1 // pred_region
      %17 = dma.done [#allocation1], 16
    $region9: #{tile.28} parent=1 // pred_fallthru
      _
    %v18 = vld [vmem:[#allocation0] ss:$0 sm:$0xff]
    %19 = vst [vmem:[%s1] sm:$0xff] %v18
    %s20 = scalar_lea.vmem %s1, 8
    %21 = vst [vmem:[%s20] sm:$0xff] %v18
    %22 = vsyncpa [#allocation1], 1

// kernel: tile.29
$region0: #{tile.29}
  %s0 = inlined_call_operand.vmem [shape: f32[16,3], index: 0, kind: input, shape index: {}]
  %s1 = inlined_call_operand.vmem [shape: f32[1,48], index: 1, kind: output, shape index: {}]
  $region1: #{tile.29} parent=0
    #allocation0 [shape = 'u8[4096]{0}', space=vmem, size = 0x1000, scoped, tag = 'scoped mem for output reshape']
    %v2 = vld [vmem:[%s0] sm:$0x1]
    %vm3 = vcmask 23552
    %4 = vst.msk [vmem:[#allocation0] sm:$0x1] %vm3, %v2
    %s5 = scalar_lea.vmem %s0, 15
    %v6 = vld [vmem:[%s5] sm:$0x1]
    %7 = vrot.lane.b32.xlu0 %v6, 45
    %v8 = vpop.permute.xlu0 %7
    %vm9 = vcmask 392552
    %10 = vst.msk [vmem:[#allocation0] sm:$0x1] %vm9, %v8
    %s11 = scalar_lea.vmem %s0, 14
    %v12 = vld [vmem:[%s11] sm:$0x1]
    %13 = vrot.lane.b32.xlu0 %v12, 42
    %v14 = vpop.permute.xlu0 %13
    %vm15 = vcmask 367952
    %16 = vst.msk [vmem:[#allocation0] sm:$0x1] %vm15, %v14
    %s17 = scalar_lea.vmem %s0, 13
    %v18 = vld [vmem:[%s17] sm:$0x1]
    %19 = vrot.lane.b32.xlu0 %v18, 39
    %v20 = vpop.permute.xlu0 %19
    %vm21 = vcmask 343352
    %22 = vst.msk [vmem:[#allocation0] sm:$0x1] %vm21, %v20
    %s23 = scalar_lea.vmem %s0, 12
    %v24 = vld [vmem:[%s23] sm:$0x1]
    %25 = vrot.lane.b32.xlu0 %v24, 36
    %v26 = vpop.permute.xlu0 %25
    %vm27 = vcmask 318752
    %28 = vst.msk [vmem:[#allocation0] sm:$0x1] %vm27, %v26
    %s29 = scalar_lea.vmem %s0, 11
    %v30 = vld [vmem:[%s29] sm:$0x1]
    %31 = vrot.lane.b32.xlu0 %v30, 33
    %v32 = vpop.permute.xlu0 %31
    %vm33 = vcmask 294152
    %34 = vst.msk [vmem:[#allocation0] sm:$0x1] %vm33, %v32
    %s35 = scalar_lea.vmem %s0, 10
    %v36 = vld [vmem:[%s35] sm:$0x1]
    %37 = vrot.lane.b32.xlu0 %v36, 30
    %v38 = vpop.permute.xlu0 %37
    %vm39 = vcmask 269552
    %40 = vst.msk [vmem:[#allocation0] sm:$0x1] %vm39, %v38
    %s41 = scalar_lea.vmem %s0, 9
    %v42 = vld [vmem:[%s41] sm:$0x1]
    %43 = vrot.lane.b32.xlu0 %v42, 27
    %v44 = vpop.permute.xlu0 %43
    %vm45 = vcmask 244952
    %46 = vst.msk [vmem:[#allocation0] sm:$0x1] %vm45, %v44
    %s47 = scalar_lea.vmem %s0, 8
    %v48 = vld [vmem:[%s47] sm:$0x1]
    %49 = vrot.lane.b32.xlu0 %v48, 24
    %v50 = vpop.permute.xlu0 %49
    %vm51 = vcmask 220352
    %52 = vst.msk [vmem:[#allocation0] sm:$0x1] %vm51, %v50
    %s53 = scalar_lea.vmem %s0, 7
    %v54 = vld [vmem:[%s53] sm:$0x1]
    %55 = vrot.lane.b32.xlu0 %v54, 21
    %v56 = vpop.permute.xlu0 %55
    %vm57 = vcmask 195752
    %58 = vst.msk [vmem:[#allocation0] sm:$0x1] %vm57, %v56
    %s59 = scalar_lea.vmem %s0, 6
    %v60 = vld [vmem:[%s59] sm:$0x1]
    %61 = vrot.lane.b32.xlu0 %v60, 18
    %v62 = vpop.permute.xlu0 %61
    %vm63 = vcmask 171152
    %64 = vst.msk [vmem:[#allocation0] sm:$0x1] %vm63, %v62
    %s65 = scalar_lea.vmem %s0, 5
    %v66 = vld [vmem:[%s65] sm:$0x1]
    %67 = vrot.lane.b32.xlu0 %v66, 15
    %v68 = vpop.permute.xlu0 %67
    %vm69 = vcmask 146552
    %70 = vst.msk [vmem:[#allocation0] sm:$0x1] %vm69, %v68
    %s71 = scalar_lea.vmem %s0, 4
    %v72 = vld [vmem:[%s71] sm:$0x1]
    %73 = vrot.lane.b32.xlu0 %v72, 12
    %v74 = vpop.permute.xlu0 %73
    %vm75 = vcmask 121952
    %76 = vst.msk [vmem:[#allocation0] sm:$0x1] %vm75, %v74
    %s77 = scalar_lea.vmem %s0, 3
    %v78 = vld [vmem:[%s77] sm:$0x1]
    %79 = vrot.lane.b32.xlu0 %v78, 9
    %v80 = vpop.permute.xlu0 %79
    %vm81 = vcmask 97352
    %82 = vst.msk [vmem:[#allocation0] sm:$0x1] %vm81, %v80
    %s83 = scalar_lea.vmem %s0, 2
    %v84 = vld [vmem:[%s83] sm:$0x1]
    %85 = vrot.lane.b32.xlu0 %v84, 6
    %v86 = vpop.permute.xlu0 %85
    %vm87 = vcmask 72752
    %88 = vst.msk [vmem:[#allocation0] sm:$0x1] %vm87, %v86
    %s89 = scalar_lea.vmem %s0, 1
    %v90 = vld [vmem:[%s89] sm:$0x1]
    %91 = vrot.lane.b32.xlu0 %v90, 3
    %v92 = vpop.permute.xlu0 %91
    %vm93 = vcmask 48152
    %94 = vst.msk [vmem:[#allocation0] sm:$0x1] %vm93, %v92
    %s96 = ssub.s32 2, 1
    %v97 = vld [vmem:[#allocation0] sm:%s96]
    %s99 = ssub.s32 2, 1
    %100 = vst [vmem:[%s1] sm:%s99] %v97

// kernel: vgg_renderer_forward.1
$region0: #{vgg_renderer_forward.1}
  #allocation0 [shape = 'u32[]', space=smem, size = 0x4, offset = 0x4, fixed_abs, tag = 'smem constant byte address 0x4 - core index']
  #allocation1 [shape = 'u32[72,128]{1,0:T(1,128)}', space=vmem, size = 0x9000, scoped, tag = 'internal scratch']
  %s0 = inlined_call_operand.vmem [shape: bf16[128,8], index: 0, kind: input, shape index: {}]
  %s1 = inlined_call_operand.vmem [shape: bf16[8,256], index: 1, kind: input, shape index: {}]
  %s2 = inlined_call_operand.hbm [shape: f32[1,256], index: 2, kind: input, shape index: {}]
  %s3 = inlined_call_operand.vmem [shape: bf16[256,512], index: 3, kind: input, shape index: {}]
  %s4 = inlined_call_operand.vmem [shape: f32[1,512], index: 4, kind: input, shape index: {}]
  %s5 = inlined_call_operand.vmem [shape: bf16[128,256], index: 5, kind: input, shape index: {}]
  %s6 = inlined_call_operand.vmem [shape: f32[1,256], index: 6, kind: input, shape index: {}]
  %s7 = inlined_call_operand.vmem [shape: bf16[256,48], index: 7, kind: input, shape index: {}]
  %s8 = inlined_call_operand.vmem [shape: f32[1,48], index: 8, kind: input, shape index: {}]
  %s9 = inlined_call_operand.vmem [shape: f32[512,48], index: 9, kind: output, shape index: {}]
  %s10 = sld [smem:[#allocation0]]
  $region73: #{vgg_renderer_forward.1} parent=0
    _
  %s12 = ssub.s32 1, %s10
  %s13 = scalar_select 0, %s12, %s10
  $region1: #{vgg_renderer_forward.1} parent=0
    #allocation2 [shape = 'u8[1024]{0}', space=vmem, size = 0x400, scoped, tag = 'input window, operand 2, single buffered']
    #allocation3 [shape = 's32[2]{0}', space=sflag, size = 0x8, scoped, tag = 'scoped memory for vgg_renderer_forward.1']
    %14 = vsyncpa [#allocation3], 0
    loop: start=0, step=1, limit=4
    $region2: #{vgg_renderer_forward.1} parent=1 // loop_pre_header
      _
    $region3: #{vgg_renderer_forward.1} parent=1 // loop_header
      %s16 = sphi 0, %s20
      %p17 = scmp.ge.s32.totalorder %s16, 4
      %s26 = sphi 0, %s28
      %s29 = sphi 0, %s26
      %s30 = sphi 0, %s29
      %s46 = sphi 0, %s30
      %s50 = sphi 0, %s50
      %s52 = sphi 0, %s50
      %s53 = sphi 0, %s52
      %s67 = sphi 0, %s53
      %s71 = sphi 0, %s71
      %s73 = sphi 0, %s71
      %s74 = sphi 0, %s73
      %s88 = sphi 0, %s74
      %s92 = sphi 0, %s92
      %s94 = sphi 0, %s92
      %s95 = sphi 0, %s94
      %s109 = sphi 0, %s95
      %s113 = sphi 0, %s113
      %s115 = sphi 0, %s113
      %s116 = sphi 0, %s115
      %s130 = sphi 0, %s116
      %s134 = sphi 0, %s134
      %s136 = sphi 0, %s134
      %s137 = sphi 0, %s136
      %s151 = sphi 0, %s137
      %s155 = sphi 0, %s155
      %s157 = sphi 0, %s155
      %s158 = sphi 0, %s157
      %s172 = sphi 0, %s158
      %s176 = sphi 0, %s176
      %s178 = sphi 0, %s176
      %s179 = sphi 0, %s178
      %s193 = sphi 0, %s179
      %s197 = sphi 0, %s197
      %s199 = sphi 0, %s197
      %s200 = sphi 0, %s199
      %s214 = sphi 0, %s200
      %s220 = sphi 0, %s222
      %s223 = sphi 0, %s220
      %s224 = sphi 0, %s223
      %s240 = sphi 0, %s224
    $region4: #{vgg_renderer_forward.1} parent=1 // loop_header_branch
      %19 = sbr.rel (%p17) target = $region8
    $region5: #{vgg_renderer_forward.1} parent=1 // loop_body
      %s21 = ssub.s32 %s16, 1
      %s22 = ssub.s32 %s16, 2
      %s23 = sadd.s32 %s16, 1
      %s24 = ssub.s32 %s16, %s23
      %p25 = scmp.eq.s32.totalorder %s24, 0
      %s27 = sadd.s32 %s26, 1
      %s28 = scalar_select %p25, %s26, %s27
      %p31 = pneg %p25
      %p32 = scmp.eq.s32.totalorder %s16, 1
      %p33 = por %p31, %p32
      %p34 = scmp.ne.s32.totalorder %s26, %s29
      %p35 = scmp.eq.s32.totalorder %s16, 0
      %p36 = por %p34, %p35
      %p37 = scmp.ne.s32.totalorder %s26, %s29
      %p38 = scmp.eq.s32.totalorder %s21, 1
      %p39 = por %p37, %p38
      %p40 = scmp.ne.s32.totalorder %s29, %s30
      %p41 = scmp.eq.s32.totalorder %s21, 0
      %p42 = por %p40, %p41
      %p43 = scmp.ne.s32.totalorder %s29, %s30
      %p44 = scmp.eq.s32.totalorder %s22, 1
      %p45 = por %p43, %p44
      %p47 = scmp.ne.s32.totalorder %s30, %s46
      %p48 = scmp.eq.s32.totalorder %s22, 0
      %p49 = por %p47, %p48
      %s51 = sadd.s32 %s50, 1
      %p54 = scmp.eq.s32.totalorder %s16, 1
      %p55 = scmp.ne.s32.totalorder %s50, %s52
      %p56 = scmp.eq.s32.totalorder %s16, 0
      %p57 = por %p55, %p56
      %p58 = scmp.ne.s32.totalorder %s50, %s52
      %p59 = scmp.eq.s32.totalorder %s21, 1
      %p60 = por %p58, %p59
      %p61 = scmp.ne.s32.totalorder %s52, %s53
      %p62 = scmp.eq.s32.totalorder %s21, 0
      %p63 = por %p61, %p62
      %p64 = scmp.ne.s32.totalorder %s52, %s53
      %p65 = scmp.eq.s32.totalorder %s22, 1
      %p66 = por %p64, %p65
      %p68 = scmp.ne.s32.totalorder %s53, %s67
      %p69 = scmp.eq.s32.totalorder %s22, 0
      %p70 = por %p68, %p69
      %s72 = sadd.s32 %s71, 1
      %p75 = scmp.eq.s32.totalorder %s16, 1
      %p76 = scmp.ne.s32.totalorder %s71, %s73
      %p77 = scmp.eq.s32.totalorder %s16, 0
      %p78 = por %p76, %p77
      %p79 = scmp.ne.s32.totalorder %s71, %s73
      %p80 = scmp.eq.s32.totalorder %s21, 1
      %p81 = por %p79, %p80
      %p82 = scmp.ne.s32.totalorder %s73, %s74
      %p83 = scmp.eq.s32.totalorder %s21, 0
      %p84 = por %p82, %p83
      %p85 = scmp.ne.s32.totalorder %s73, %s74
      %p86 = scmp.eq.s32.totalorder %s22, 1
      %p87 = por %p85, %p86
      %p89 = scmp.ne.s32.totalorder %s74, %s88
      %p90 = scmp.eq.s32.totalorder %s22, 0
      %p91 = por %p89, %p90
      %s93 = sadd.s32 %s92, 1
      %p96 = scmp.eq.s32.totalorder %s16, 1
      %p97 = scmp.ne.s32.totalorder %s92, %s94
      %p98 = scmp.eq.s32.totalorder %s16, 0
      %p99 = por %p97, %p98
      %p100 = scmp.ne.s32.totalorder %s92, %s94
      %p101 = scmp.eq.s32.totalorder %s21, 1
      %p102 = por %p100, %p101
      %p103 = scmp.ne.s32.totalorder %s94, %s95
      %p104 = scmp.eq.s32.totalorder %s21, 0
      %p105 = por %p103, %p104
      %p106 = scmp.ne.s32.totalorder %s94, %s95
      %p107 = scmp.eq.s32.totalorder %s22, 1
      %p108 = por %p106, %p107
      %p110 = scmp.ne.s32.totalorder %s95, %s109
      %p111 = scmp.eq.s32.totalorder %s22, 0
      %p112 = por %p110, %p111
      %s114 = sadd.s32 %s113, 1
      %p117 = scmp.eq.s32.totalorder %s16, 1
      %p118 = scmp.ne.s32.totalorder %s113, %s115
      %p119 = scmp.eq.s32.totalorder %s16, 0
      %p120 = por %p118, %p119
      %p121 = scmp.ne.s32.totalorder %s113, %s115
      %p122 = scmp.eq.s32.totalorder %s21, 1
      %p123 = por %p121, %p122
      %p124 = scmp.ne.s32.totalorder %s115, %s116
      %p125 = scmp.eq.s32.totalorder %s21, 0
      %p126 = por %p124, %p125
      %p127 = scmp.ne.s32.totalorder %s115, %s116
      %p128 = scmp.eq.s32.totalorder %s22, 1
      %p129 = por %p127, %p128
      %p131 = scmp.ne.s32.totalorder %s116, %s130
      %p132 = scmp.eq.s32.totalorder %s22, 0
      %p133 = por %p131, %p132
      %s135 = sadd.s32 %s134, 1
      %p138 = scmp.eq.s32.totalorder %s16, 1
      %p139 = scmp.ne.s32.totalorder %s134, %s136
      %p140 = scmp.eq.s32.totalorder %s16, 0
      %p141 = por %p139, %p140
      %p142 = scmp.ne.s32.totalorder %s134, %s136
      %p143 = scmp.eq.s32.totalorder %s21, 1
      %p144 = por %p142, %p143
      %p145 = scmp.ne.s32.totalorder %s136, %s137
      %p146 = scmp.eq.s32.totalorder %s21, 0
      %p147 = por %p145, %p146
      %p148 = scmp.ne.s32.totalorder %s136, %s137
      %p149 = scmp.eq.s32.totalorder %s22, 1
      %p150 = por %p148, %p149
      %p152 = scmp.ne.s32.totalorder %s137, %s151
      %p153 = scmp.eq.s32.totalorder %s22, 0
      %p154 = por %p152, %p153
      %s156 = sadd.s32 %s155, 1
      %p159 = scmp.eq.s32.totalorder %s16, 1
      %p160 = scmp.ne.s32.totalorder %s155, %s157
      %p161 = scmp.eq.s32.totalorder %s16, 0
      %p162 = por %p160, %p161
      %p163 = scmp.ne.s32.totalorder %s155, %s157
      %p164 = scmp.eq.s32.totalorder %s21, 1
      %p165 = por %p163, %p164
      %p166 = scmp.ne.s32.totalorder %s157, %s158
      %p167 = scmp.eq.s32.totalorder %s21, 0
      %p168 = por %p166, %p167
      %p169 = scmp.ne.s32.totalorder %s157, %s158
      %p170 = scmp.eq.s32.totalorder %s22, 1
      %p171 = por %p169, %p170
      %p173 = scmp.ne.s32.totalorder %s158, %s172
      %p174 = scmp.eq.s32.totalorder %s22, 0
      %p175 = por %p173, %p174
      %s177 = sadd.s32 %s176, 1
      %p180 = scmp.eq.s32.totalorder %s16, 1
      %p181 = scmp.ne.s32.totalorder %s176, %s178
      %p182 = scmp.eq.s32.totalorder %s16, 0
      %p183 = por %p181, %p182
      %p184 = scmp.ne.s32.totalorder %s176, %s178
      %p185 = scmp.eq.s32.totalorder %s21, 1
      %p186 = por %p184, %p185
      %p187 = scmp.ne.s32.totalorder %s178, %s179
      %p188 = scmp.eq.s32.totalorder %s21, 0
      %p189 = por %p187, %p188
      %p190 = scmp.ne.s32.totalorder %s178, %s179
      %p191 = scmp.eq.s32.totalorder %s22, 1
      %p192 = por %p190, %p191
      %p194 = scmp.ne.s32.totalorder %s179, %s193
      %p195 = scmp.eq.s32.totalorder %s22, 0
      %p196 = por %p194, %p195
      %s198 = sadd.s32 %s197, 1
      %p201 = scmp.eq.s32.totalorder %s16, 1
      %p202 = scmp.ne.s32.totalorder %s197, %s199
      %p203 = scmp.eq.s32.totalorder %s16, 0
      %p204 = por %p202, %p203
      %p205 = scmp.ne.s32.totalorder %s197, %s199
      %p206 = scmp.eq.s32.totalorder %s21, 1
      %p207 = por %p205, %p206
      %p208 = scmp.ne.s32.totalorder %s199, %s200
      %p209 = scmp.eq.s32.totalorder %s21, 0
      %p210 = por %p208, %p209
      %p211 = scmp.ne.s32.totalorder %s199, %s200
      %p212 = scmp.eq.s32.totalorder %s22, 1
      %p213 = por %p211, %p212
      %p215 = scmp.ne.s32.totalorder %s200, %s214
      %p216 = scmp.eq.s32.totalorder %s22, 0
      %p217 = por %p215, %p216
      %s218 = ssub.s32 %s16, %s23
      %p219 = scmp.eq.s32.totalorder %s218, 0
      %s221 = sadd.s32 %s220, 1
      %s222 = scalar_select %p219, %s220, %s221
      %p225 = pneg %p219
      %p226 = scmp.eq.s32.totalorder %s16, 1
      %p227 = por %p225, %p226
      %p228 = scmp.ne.s32.totalorder %s220, %s223
      %p229 = scmp.eq.s32.totalorder %s16, 0
      %p230 = por %p228, %p229
      %p231 = scmp.ne.s32.totalorder %s220, %s223
      %p232 = scmp.eq.s32.totalorder %s21, 1
      %p233 = por %p231, %p232
      %p234 = scmp.ne.s32.totalorder %s223, %s224
      %p235 = scmp.eq.s32.totalorder %s21, 0
      %p236 = por %p234, %p235
      %p237 = scmp.ne.s32.totalorder %s223, %s224
      %p238 = scmp.eq.s32.totalorder %s22, 1
      %p239 = por %p237, %p238
      %p241 = scmp.ne.s32.totalorder %s224, %s240
      %p242 = scmp.eq.s32.totalorder %s22, 0
      %p243 = por %p241, %p242
      %p244 = scmp.le.s32.totalorder 1, %s16
      %p245 = scmp.lt.s32.totalorder %s16, 3
      %p246 = pnand %p244, %p245
      %p247 = pneg %p246
      // Predicated region
      $region9: #{vgg_renderer_forward.1} parent=5 // pred_check
        _
      $region10: #{vgg_renderer_forward.1} parent=5 // pred_check_branch
        %249 = sbr.rel (%p246) target = $region12
      $region11: #{vgg_renderer_forward.1} parent=5 // pred_region
        %s250 = ssub.s32 %s16, 1
        // Predicated region
        $region13: #{vgg_renderer_forward.1} parent=11 // pred_check
          %p251 = pneg %p63
        $region14: #{vgg_renderer_forward.1} parent=11 // pred_check_branch
          %253 = sbr.rel (%p251) target = $region16
        $region15: #{vgg_renderer_forward.1} parent=11 // pred_region
          _
        $region16: #{vgg_renderer_forward.1} parent=11 // pred_fallthru
          _
        // Predicated region
        $region17: #{vgg_renderer_forward.1} parent=11 // pred_check
          %p254 = pneg %p84
        $region18: #{vgg_renderer_forward.1} parent=11 // pred_check_branch
          %256 = sbr.rel (%p254) target = $region20
        $region19: #{vgg_renderer_forward.1} parent=11 // pred_region
          %258 = vsyncadd [#allocation3], 0
          %s260 = sshll.u32 %s2, 4
          %s261 = int_to_ptr.hbm [resolvable:$true] %s260
          %s262 = sshll.u32 [#allocation2], 4
          %s263 = int_to_ptr.vmem [resolvable:$true] %s262
          %265 = dma.hbm_to_vmem [thread:$0]  %s261, 32, %s263, [#allocation3]
        $region20: #{vgg_renderer_forward.1} parent=11 // pred_fallthru
          _
        // Predicated region
        $region21: #{vgg_renderer_forward.1} parent=11 // pred_check
          %p266 = pneg %p105
        $region22: #{vgg_renderer_forward.1} parent=11 // pred_check_branch
          %268 = sbr.rel (%p266) target = $region24
        $region23: #{vgg_renderer_forward.1} parent=11 // pred_region
          _
        $region24: #{vgg_renderer_forward.1} parent=11 // pred_fallthru
          _
        // Predicated region
        $region25: #{vgg_renderer_forward.1} parent=11 // pred_check
          %p269 = pneg %p126
        $region26: #{vgg_renderer_forward.1} parent=11 // pred_check_branch
          %271 = sbr.rel (%p269) target = $region28
        $region27: #{vgg_renderer_forward.1} parent=11 // pred_region
          _
        $region28: #{vgg_renderer_forward.1} parent=11 // pred_fallthru
          _
        // Predicated region
        $region29: #{vgg_renderer_forward.1} parent=11 // pred_check
          %p272 = pneg %p147
        $region30: #{vgg_renderer_forward.1} parent=11 // pred_check_branch
          %274 = sbr.rel (%p272) target = $region32
        $region31: #{vgg_renderer_forward.1} parent=11 // pred_region
          _
        $region32: #{vgg_renderer_forward.1} parent=11 // pred_fallthru
          _
        // Predicated region
        $region33: #{vgg_renderer_forward.1} parent=11 // pred_check
          %p275 = pneg %p168
        $region34: #{vgg_renderer_forward.1} parent=11 // pred_check_branch
          %277 = sbr.rel (%p275) target = $region36
        $region35: #{vgg_renderer_forward.1} parent=11 // pred_region
          _
        $region36: #{vgg_renderer_forward.1} parent=11 // pred_fallthru
          _
        // Predicated region
        $region37: #{vgg_renderer_forward.1} parent=11 // pred_check
          %p278 = pneg %p189
        $region38: #{vgg_renderer_forward.1} parent=11 // pred_check_branch
          %280 = sbr.rel (%p278) target = $region40
        $region39: #{vgg_renderer_forward.1} parent=11 // pred_region
          _
        $region40: #{vgg_renderer_forward.1} parent=11 // pred_fallthru
          _
        // Predicated region
        $region41: #{vgg_renderer_forward.1} parent=11 // pred_check
          %p281 = pneg %p210
        $region42: #{vgg_renderer_forward.1} parent=11 // pred_check_branch
          %283 = sbr.rel (%p281) target = $region44
        $region43: #{vgg_renderer_forward.1} parent=11 // pred_region
          _
        $region44: #{vgg_renderer_forward.1} parent=11 // pred_fallthru
          _
      $region12: #{vgg_renderer_forward.1} parent=5 // pred_fallthru
        _
      %p284 = scmp.lt.s32.totalorder %s16, 2
      // Predicated region
      $region45: #{vgg_renderer_forward.1} parent=5 // pred_check
        %p285 = pneg %p284
      $region46: #{vgg_renderer_forward.1} parent=5 // pred_check_branch
        %287 = sbr.rel (%p285) target = $region48
      $region47: #{vgg_renderer_forward.1} parent=5 // pred_region
        // Predicated region
        $region49: #{vgg_renderer_forward.1} parent=47 // pred_check
          %p288 = pneg %p36
        $region50: #{vgg_renderer_forward.1} parent=47 // pred_check_branch
          %290 = sbr.rel (%p288) target = $region52
        $region51: #{vgg_renderer_forward.1} parent=47 // pred_region
          %s291 = smul.u32 8, %s16
          %p292 = scmp.lt.s32.totalorder %s291, 15
          %s293 = scalar_select %p292, %s291, 15
          %s294 = smul.addr %s293, 4
          %s295 = scalar_lea.vmem %s0, %s294
          %s296 = smul.u32 8, %s16
        $region52: #{vgg_renderer_forward.1} parent=47 // pred_fallthru
          _
      $region48: #{vgg_renderer_forward.1} parent=5 // pred_fallthru
        _
      %p297 = scmp.le.s32.totalorder 1, %s16
      %p298 = scmp.lt.s32.totalorder %s16, 3
      %p299 = pnand %p297, %p298
      %p300 = pneg %p299
      // Predicated region
      $region53: #{vgg_renderer_forward.1} parent=5 // pred_check
        _
      $region54: #{vgg_renderer_forward.1} parent=5 // pred_check_branch
        %302 = sbr.rel (%p299) target = $region56
      $region55: #{vgg_renderer_forward.1} parent=5 // pred_region
        %s303 = ssub.s32 %s16, 1
        // Predicated region
        $region57: #{vgg_renderer_forward.1} parent=55 // pred_check
          %p304 = pneg %p84
        $region58: #{vgg_renderer_forward.1} parent=55 // pred_check_branch
          %306 = sbr.rel (%p304) target = $region60
        $region59: #{vgg_renderer_forward.1} parent=55 // pred_region
          %308 = dma.done [#allocation3], 32
        $region60: #{vgg_renderer_forward.1} parent=55 // pred_fallthru
          _
        %s309 = smul.u32 8, %s21
        %p310 = scmp.lt.s32.totalorder %s309, 15
        %s311 = scalar_select %p310, %s309, 15
        %s312 = smul.addr %s311, 4
        %s313 = scalar_lea.vmem %s0, %s312
        %p314 = pneg %p42
        %p315 = pneg %p39
        %p316 = pneg %p63
        %p317 = pneg %p60
        %p318 = pneg %p84
        %p319 = pneg %p81
        %p320 = pneg %p105
        %p321 = pneg %p102
        %p322 = pneg %p126
        %p323 = pneg %p123
        %p324 = pneg %p147
        %p325 = pneg %p144
        %p326 = pneg %p168
        %p327 = pneg %p165
        %p328 = pneg %p189
        %p329 = pneg %p186
        %p330 = pneg %p210
        %p331 = pneg %p207
        %p332 = pneg %p236
        %p333 = pneg %p233
        %s334 = smul.u32 32, %s21
        %p335 = scmp.lt.s32.totalorder %s334, 63
        %s336 = scalar_select %p335, %s334, 63
        %s337 = smul.addr %s336, 8
        %s338 = scalar_lea.vmem %s9, %s337
        %s339 = smul.u32 8, %s21
        %p340 = scmp.lt.s32.totalorder %s339, 15
        %s341 = scalar_select %p340, %s339, 15
        %s342 = smul.addr %s341, 4
        %s343 = scalar_lea.vmem %s0, %s342
        %s344 = smul.u32 8, %s21
        %s345 = smul.u32 32, %s21
        %p346 = scmp.lt.s32.totalorder %s345, 63
        %s347 = scalar_select %p346, %s345, 63
        %s348 = smul.addr %s347, 8
        %s349 = scalar_lea.vmem %s9, %s348
        %s350 = smul.u32 32, %s21
        %v352 = vld [vmem:[#allocation2] sm:$0x3]
        %v353 = vld [vmem:[%s4] sm:$0xf]
        %v354 = vld [vmem:[%s6] sm:$0x3]
        %v355 = vld [vmem:[%s8] sm:$0x1]
        %v356 = vld [vmem:[%s343] sm:$0xf]
        %v357 = vld [vmem:[%s343 + $0x4] sm:$0xf]
        %v358 = vld [vmem:[%s343 + $0x8] sm:$0xf]
        %v359 = vld [vmem:[%s343 + $0xc] sm:$0xf]
        %v360 = vld [vmem:[%s343 + $0x10] sm:$0xf]
        %v361 = vld [vmem:[%s343 + $0x14] sm:$0xf]
        %v362 = vld [vmem:[%s343 + $0x18] sm:$0xf]
        %v363 = vld [vmem:[%s343 + $0x1c] sm:$0xf]
        %v364 = vld [vmem:[%s1] sm:$0xff]
        %v366 = vperm.slane %v352, 0
        %v367 = vperm.slane %v352, 1
        %v378 = vunpack.c.l.b16 %v356
        %v379 = vunpack.c.l.b16 %v357
        %v380 = vunpack.c.l.b16 %v358
        %v381 = vunpack.c.l.b16 %v359
        %v382 = vunpack.c.l.b16 %v360
        %v383 = vunpack.c.l.b16 %v361
        %v384 = vunpack.c.l.b16 %v362
        %v385 = vunpack.c.l.b16 %v363
        %v386 = vpack.c.b16 %v379, %v378
        %v387 = vpack.c.b16 %v381, %v380
        %v388 = vpack.c.b16 %v383, %v382
        %v389 = vpack.c.b16 %v385, %v384
        %v391 = vunpack.c.l.b16 %v364
        %v392 = vunpack.c.h.b16 %v364
        %v393 = vpack.c.b16 %v391, %v391
        %v394 = vpack.c.b16 %v392, %v392
        %vm395 = vcmask 64512
        %v397 = vsel %vm395, %v386, 0
        %v400 = vsel %vm395, %v387, 0
        %v403 = vsel %vm395, %v388, 0
        %v406 = vsel %vm395, %v389, 0
        %vm408 = vcmask 1043456
        %v410 = vsel %vm408, %v393, 0
        %v413 = vsel %vm408, %v394, 0
        %415 = vmatpush.bf16.msra.mxu0 0
        %416 = vmatpush.bf16.msra.mxu0 0
        %417 = vmatpush.bf16.msra.mxu0 0
        %418 = vmatpush.bf16.msra.mxu0 0
        %419 = vmatpush.bf16.msra.mxu0 0
        %420 = vmatpush.bf16.msra.mxu0 0
        %421 = vmatpush.bf16.msra.mxu0 0
        %422 = vmatpush.bf16.msra.mxu0 %v410
        %423 = vmatmul.bf16.gmra.mxu0 %v397
        %v424 = vpop.f32.mrf.mxu0
        %v425 = vadd.f32 %v366, %v424
        %v426 = vpop.f32.mrf.mxu0
        %v427 = vadd.f32 %v366, %v426
        %428 = vmatmul.bf16.gmra.mxu0 %v400
        %v429 = vpop.f32.mrf.mxu0
        %v430 = vadd.f32 %v366, %v429
        %v431 = vpop.f32.mrf.mxu0
        %v432 = vadd.f32 %v366, %v431
        %433 = vmatmul.bf16.gmra.mxu0 %v403
        %v434 = vpop.f32.mrf.mxu0
        %v435 = vadd.f32 %v366, %v434
        %v436 = vpop.f32.mrf.mxu0
        %v437 = vadd.f32 %v366, %v436
        %438 = vmatmul.bf16.gmra.mxu0 %v406
        %v439 = vpop.f32.mrf.mxu0
        %v440 = vadd.f32 %v366, %v439
        %v441 = vpop.f32.mrf.mxu0
        %v442 = vadd.f32 %v366, %v441
        %443 = vdwg.mxu0
        %444 = vmatpush.bf16.msra.mxu0 0
        %445 = vmatpush.bf16.msra.mxu0 0
        %446 = vmatpush.bf16.msra.mxu0 0
        %447 = vmatpush.bf16.msra.mxu0 0
        %448 = vmatpush.bf16.msra.mxu0 0
        %449 = vmatpush.bf16.msra.mxu0 0
        %450 = vmatpush.bf16.msra.mxu0 0
        %451 = vmatpush.bf16.msra.mxu0 %v413
        %452 = vmatmul.bf16.gmra.mxu0 %v397
        %v453 = vpop.f32.mrf.mxu0
        %v454 = vadd.f32 %v367, %v453
        %v455 = vpop.f32.mrf.mxu0
        %v456 = vadd.f32 %v367, %v455
        %457 = vmatmul.bf16.gmra.mxu0 %v400
        %v458 = vpop.f32.mrf.mxu0
        %v459 = vadd.f32 %v367, %v458
        %v460 = vpop.f32.mrf.mxu0
        %v461 = vadd.f32 %v367, %v460
        %462 = vmatmul.bf16.gmra.mxu0 %v403
        %v463 = vpop.f32.mrf.mxu0
        %v464 = vadd.f32 %v367, %v463
        %v465 = vpop.f32.mrf.mxu0
        %v466 = vadd.f32 %v367, %v465
        %467 = vmatmul.bf16.gmra.mxu0 %v406
        %v468 = vpop.f32.mrf.mxu0
        %v469 = vadd.f32 %v367, %v468
        %v470 = vpop.f32.mrf.mxu0
        %v471 = vadd.f32 %v367, %v470
        %472 = vdwg.mxu0
        %v473 = vmax.f32 %v425, 0.0
        %v474 = vmax.f32 %v454, 0.0
        %v475 = vmax.f32 %v427, 0.0
        %v476 = vmax.f32 %v456, 0.0
        %v477 = vmax.f32 %v430, 0.0
        %v478 = vmax.f32 %v459, 0.0
        %v479 = vmax.f32 %v432, 0.0
        %v480 = vmax.f32 %v461, 0.0
        %v481 = vmax.f32 %v435, 0.0
        %v482 = vmax.f32 %v464, 0.0
        %v483 = vmax.f32 %v437, 0.0
        %v484 = vmax.f32 %v466, 0.0
        %v485 = vmax.f32 %v440, 0.0
        %v486 = vmax.f32 %v469, 0.0
        %v487 = vmax.f32 %v442, 0.0
        %v488 = vmax.f32 %v471, 0.0
        %v489 = vpack.c.bf16 %v475, %v473
        %v490 = vpack.c.bf16 %v476, %v474
        %v491 = vpack.c.bf16 %v479, %v477
        %v492 = vpack.c.bf16 %v480, %v478
        %v493 = vpack.c.bf16 %v483, %v481
        %v494 = vpack.c.bf16 %v484, %v482
        %v495 = vpack.c.bf16 %v487, %v485
        %v496 = vpack.c.bf16 %v488, %v486
        %v497 = vld [vmem:[%s3] sm:$0xff]
        %v498 = vld [vmem:[%s3 + $0x8] sm:$0xff]
        %v499 = vld [vmem:[%s3 + $0x10] sm:$0xff]
        %v500 = vld [vmem:[%s3 + $0x18] sm:$0xff]
        %v501 = vld [vmem:[%s3 + $0x20] sm:$0xff]
        %v502 = vld [vmem:[%s3 + $0x28] sm:$0xff]
        %v503 = vld [vmem:[%s3 + $0x30] sm:$0xff]
        %v504 = vld [vmem:[%s3 + $0x38] sm:$0xff]
        %v505 = vld [vmem:[%s3 + $0x40] sm:$0xff]
        %v506 = vld [vmem:[%s3 + $0x48] sm:$0xff]
        %v507 = vld [vmem:[%s3 + $0x50] sm:$0xff]
        %v508 = vld [vmem:[%s3 + $0x58] sm:$0xff]
        %v509 = vld [vmem:[%s3 + $0x60] sm:$0xff]
        %v510 = vld [vmem:[%s3 + $0x68] sm:$0xff]
        %v511 = vld [vmem:[%s3 + $0x70] sm:$0xff]
        %v512 = vld [vmem:[%s3 + $0x78] sm:$0xff]
        %v513 = vld [vmem:[%s3 + $0x80] sm:$0xff]
        %v514 = vld [vmem:[%s3 + $0x88] sm:$0xff]
        %v515 = vld [vmem:[%s3 + $0x90] sm:$0xff]
        %v516 = vld [vmem:[%s3 + $0x98] sm:$0xff]
        %v517 = vld [vmem:[%s3 + $0xa0] sm:$0xff]
        %v518 = vld [vmem:[%s3 + $0xa8] sm:$0xff]
        %v519 = vld [vmem:[%s3 + $0xb0] sm:$0xff]
        %v520 = vld [vmem:[%s3 + $0xb8] sm:$0xff]
        %v521 = vld [vmem:[%s3 + $0xc0] sm:$0xff]
        %v522 = vld [vmem:[%s3 + $0xc8] sm:$0xff]
        %v523 = vld [vmem:[%s3 + $0xd0] sm:$0xff]
        %v524 = vld [vmem:[%s3 + $0xd8] sm:$0xff]
        %v525 = vld [vmem:[%s3 + $0xe0] sm:$0xff]
        %v526 = vld [vmem:[%s3 + $0xe8] sm:$0xff]
        %v527 = vld [vmem:[%s3 + $0xf0] sm:$0xff]
        %v528 = vld [vmem:[%s3 + $0xf8] sm:$0xff]
        %v529 = vld [vmem:[%s3 + $0x100] sm:$0xff]
        %v530 = vld [vmem:[%s3 + $0x108] sm:$0xff]
        %v531 = vld [vmem:[%s3 + $0x110] sm:$0xff]
        %v532 = vld [vmem:[%s3 + $0x118] sm:$0xff]
        %v533 = vld [vmem:[%s3 + $0x120] sm:$0xff]
        %v534 = vld [vmem:[%s3 + $0x128] sm:$0xff]
        %v535 = vld [vmem:[%s3 + $0x130] sm:$0xff]
        %v536 = vld [vmem:[%s3 + $0x138] sm:$0xff]
        %v537 = vld [vmem:[%s3 + $0x140] sm:$0xff]
        %v538 = vld [vmem:[%s3 + $0x148] sm:$0xff]
        %v539 = vld [vmem:[%s3 + $0x150] sm:$0xff]
        %v540 = vld [vmem:[%s3 + $0x158] sm:$0xff]
        %v541 = vld [vmem:[%s3 + $0x160] sm:$0xff]
        %v542 = vld [vmem:[%s3 + $0x168] sm:$0xff]
        %v543 = vld [vmem:[%s3 + $0x170] sm:$0xff]
        %v544 = vld [vmem:[%s3 + $0x178] sm:$0xff]
        %v545 = vld [vmem:[%s3 + $0x180] sm:$0xff]
        %v546 = vld [vmem:[%s3 + $0x188] sm:$0xff]
        %v547 = vld [vmem:[%s3 + $0x190] sm:$0xff]
        %v548 = vld [vmem:[%s3 + $0x198] sm:$0xff]
        %v549 = vld [vmem:[%s3 + $0x1a0] sm:$0xff]
        %v550 = vld [vmem:[%s3 + $0x1a8] sm:$0xff]
        %v551 = vld [vmem:[%s3 + $0x1b0] sm:$0xff]
        %v552 = vld [vmem:[%s3 + $0x1b8] sm:$0xff]
        %v553 = vld [vmem:[%s3 + $0x1c0] sm:$0xff]
        %v554 = vld [vmem:[%s3 + $0x1c8] sm:$0xff]
        %v555 = vld [vmem:[%s3 + $0x1d0] sm:$0xff]
        %v556 = vld [vmem:[%s3 + $0x1d8] sm:$0xff]
        %v557 = vld [vmem:[%s3 + $0x1e0] sm:$0xff]
        %v558 = vld [vmem:[%s3 + $0x1e8] sm:$0xff]
        %v559 = vld [vmem:[%s3 + $0x1f0] sm:$0xff]
        %v560 = vld [vmem:[%s3 + $0x1f8] sm:$0xff]
        %v562 = vperm.slane %v353, 0
        %v563 = vperm.slane %v353, 1
        %v564 = vperm.slane %v353, 2
        %v565 = vperm.slane %v353, 3
        %v634 = vunpack.c.l.b16 %v497
        %v635 = vunpack.c.h.b16 %v497
        %v636 = vunpack.c.l.b16 %v498
        %v637 = vunpack.c.h.b16 %v498
        %v638 = vunpack.c.l.b16 %v499
        %v639 = vunpack.c.h.b16 %v499
        %v640 = vunpack.c.l.b16 %v500
        %v641 = vunpack.c.h.b16 %v500
        %v642 = vunpack.c.l.b16 %v501
        %v643 = vunpack.c.h.b16 %v501
        %v644 = vunpack.c.l.b16 %v502
        %v645 = vunpack.c.h.b16 %v502
        %v646 = vunpack.c.l.b16 %v503
        %v647 = vunpack.c.h.b16 %v503
        %v648 = vunpack.c.l.b16 %v504
        %v649 = vunpack.c.h.b16 %v504
        %v650 = vunpack.c.l.b16 %v505
        %v651 = vunpack.c.h.b16 %v505
        %v652 = vunpack.c.l.b16 %v506
        %v653 = vunpack.c.h.b16 %v506
        %v654 = vunpack.c.l.b16 %v507
        %v655 = vunpack.c.h.b16 %v507
        %v656 = vunpack.c.l.b16 %v508
        %v657 = vunpack.c.h.b16 %v508
        %v658 = vunpack.c.l.b16 %v509
        %v659 = vunpack.c.h.b16 %v509
        %v660 = vunpack.c.l.b16 %v510
        %v661 = vunpack.c.h.b16 %v510
        %v662 = vunpack.c.l.b16 %v511
        %v663 = vunpack.c.h.b16 %v511
        %v664 = vunpack.c.l.b16 %v512
        %v665 = vunpack.c.h.b16 %v512
        %v666 = vunpack.c.l.b16 %v513
        %v667 = vunpack.c.h.b16 %v513
        %v668 = vunpack.c.l.b16 %v514
        %v669 = vunpack.c.h.b16 %v514
        %v670 = vunpack.c.l.b16 %v515
        %v671 = vunpack.c.h.b16 %v515
        %v672 = vunpack.c.l.b16 %v516
        %v673 = vunpack.c.h.b16 %v516
        %v674 = vunpack.c.l.b16 %v517
        %v675 = vunpack.c.h.b16 %v517
        %v676 = vunpack.c.l.b16 %v518
        %v677 = vunpack.c.h.b16 %v518
        %v678 = vunpack.c.l.b16 %v519
        %v679 = vunpack.c.h.b16 %v519
        %v680 = vunpack.c.l.b16 %v520
        %v681 = vunpack.c.h.b16 %v520
        %v682 = vunpack.c.l.b16 %v521
        %v683 = vunpack.c.h.b16 %v521
        %v684 = vunpack.c.l.b16 %v522
        %v685 = vunpack.c.h.b16 %v522
        %v686 = vunpack.c.l.b16 %v523
        %v687 = vunpack.c.h.b16 %v523
        %v688 = vunpack.c.l.b16 %v524
        %v689 = vunpack.c.h.b16 %v524
        %v690 = vunpack.c.l.b16 %v525
        %v691 = vunpack.c.h.b16 %v525
        %v692 = vunpack.c.l.b16 %v526
        %v693 = vunpack.c.h.b16 %v526
        %v694 = vunpack.c.l.b16 %v527
        %v695 = vunpack.c.h.b16 %v527
        %v696 = vunpack.c.l.b16 %v528
        %v697 = vunpack.c.h.b16 %v528
        %v698 = vunpack.c.l.b16 %v529
        %v699 = vunpack.c.h.b16 %v529
        %v700 = vunpack.c.l.b16 %v530
        %v701 = vunpack.c.h.b16 %v530
        %v702 = vunpack.c.l.b16 %v531
        %v703 = vunpack.c.h.b16 %v531
        %v704 = vunpack.c.l.b16 %v532
        %v705 = vunpack.c.h.b16 %v532
        %v706 = vunpack.c.l.b16 %v533
        %v707 = vunpack.c.h.b16 %v533
        %v708 = vunpack.c.l.b16 %v534
        %v709 = vunpack.c.h.b16 %v534
        %v710 = vunpack.c.l.b16 %v535
        %v711 = vunpack.c.h.b16 %v535
        %v712 = vunpack.c.l.b16 %v536
        %v713 = vunpack.c.h.b16 %v536
        %v714 = vunpack.c.l.b16 %v537
        %v715 = vunpack.c.h.b16 %v537
        %v716 = vunpack.c.l.b16 %v538
        %v717 = vunpack.c.h.b16 %v538
        %v718 = vunpack.c.l.b16 %v539
        %v719 = vunpack.c.h.b16 %v539
        %v720 = vunpack.c.l.b16 %v540
        %v721 = vunpack.c.h.b16 %v540
        %v722 = vunpack.c.l.b16 %v541
        %v723 = vunpack.c.h.b16 %v541
        %v724 = vunpack.c.l.b16 %v542
        %v725 = vunpack.c.h.b16 %v542
        %v726 = vunpack.c.l.b16 %v543
        %v727 = vunpack.c.h.b16 %v543
        %v728 = vunpack.c.l.b16 %v544
        %v729 = vunpack.c.h.b16 %v544
        %v730 = vunpack.c.l.b16 %v545
        %v731 = vunpack.c.h.b16 %v545
        %v732 = vunpack.c.l.b16 %v546
        %v733 = vunpack.c.h.b16 %v546
        %v734 = vunpack.c.l.b16 %v547
        %v735 = vunpack.c.h.b16 %v547
        %v736 = vunpack.c.l.b16 %v548
        %v737 = vunpack.c.h.b16 %v548
        %v738 = vunpack.c.l.b16 %v549
        %v739 = vunpack.c.h.b16 %v549
        %v740 = vunpack.c.l.b16 %v550
        %v741 = vunpack.c.h.b16 %v550
        %v742 = vunpack.c.l.b16 %v551
        %v743 = vunpack.c.h.b16 %v551
        %v744 = vunpack.c.l.b16 %v552
        %v745 = vunpack.c.h.b16 %v552
        %v746 = vunpack.c.l.b16 %v553
        %v747 = vunpack.c.h.b16 %v553
        %v748 = vunpack.c.l.b16 %v554
        %v749 = vunpack.c.h.b16 %v554
        %v750 = vunpack.c.l.b16 %v555
        %v751 = vunpack.c.h.b16 %v555
        %v752 = vunpack.c.l.b16 %v556
        %v753 = vunpack.c.h.b16 %v556
        %v754 = vunpack.c.l.b16 %v557
        %v755 = vunpack.c.h.b16 %v557
        %v756 = vunpack.c.l.b16 %v558
        %v757 = vunpack.c.h.b16 %v558
        %v758 = vunpack.c.l.b16 %v559
        %v759 = vunpack.c.h.b16 %v559
        %v760 = vunpack.c.l.b16 %v560
        %v761 = vunpack.c.h.b16 %v560
        %v762 = vpack.c.b16 %v638, %v634
        %v763 = vpack.c.b16 %v639, %v635
        %v764 = vpack.c.b16 %v640, %v636
        %v765 = vpack.c.b16 %v641, %v637
        %v766 = vpack.c.b16 %v646, %v642
        %v767 = vpack.c.b16 %v647, %v643
        %v768 = vpack.c.b16 %v648, %v644
        %v769 = vpack.c.b16 %v649, %v645
        %v770 = vpack.c.b16 %v654, %v650
        %v771 = vpack.c.b16 %v655, %v651
        %v772 = vpack.c.b16 %v656, %v652
        %v773 = vpack.c.b16 %v657, %v653
        %v774 = vpack.c.b16 %v662, %v658
        %v775 = vpack.c.b16 %v663, %v659
        %v776 = vpack.c.b16 %v664, %v660
        %v777 = vpack.c.b16 %v665, %v661
        %v778 = vpack.c.b16 %v670, %v666
        %v779 = vpack.c.b16 %v671, %v667
        %v780 = vpack.c.b16 %v672, %v668
        %v781 = vpack.c.b16 %v673, %v669
        %v782 = vpack.c.b16 %v678, %v674
        %v783 = vpack.c.b16 %v679, %v675
        %v784 = vpack.c.b16 %v680, %v676
        %v785 = vpack.c.b16 %v681, %v677
        %v786 = vpack.c.b16 %v686, %v682
        %v787 = vpack.c.b16 %v687, %v683
        %v788 = vpack.c.b16 %v688, %v684
        %v789 = vpack.c.b16 %v689, %v685
        %v790 = vpack.c.b16 %v694, %v690
        %v791 = vpack.c.b16 %v695, %v691
        %v792 = vpack.c.b16 %v696, %v692
        %v793 = vpack.c.b16 %v697, %v693
        %v794 = vpack.c.b16 %v702, %v698
        %v795 = vpack.c.b16 %v703, %v699
        %v796 = vpack.c.b16 %v704, %v700
        %v797 = vpack.c.b16 %v705, %v701
        %v798 = vpack.c.b16 %v710, %v706
        %v799 = vpack.c.b16 %v711, %v707
        %v800 = vpack.c.b16 %v712, %v708
        %v801 = vpack.c.b16 %v713, %v709
        %v802 = vpack.c.b16 %v718, %v714
        %v803 = vpack.c.b16 %v719, %v715
        %v804 = vpack.c.b16 %v720, %v716
        %v805 = vpack.c.b16 %v721, %v717
        %v806 = vpack.c.b16 %v726, %v722
        %v807 = vpack.c.b16 %v727, %v723
        %v808 = vpack.c.b16 %v728, %v724
        %v809 = vpack.c.b16 %v729, %v725
        %v810 = vpack.c.b16 %v734, %v730
        %v811 = vpack.c.b16 %v735, %v731
        %v812 = vpack.c.b16 %v736, %v732
        %v813 = vpack.c.b16 %v737, %v733
        %v814 = vpack.c.b16 %v742, %v738
        %v815 = vpack.c.b16 %v743, %v739
        %v816 = vpack.c.b16 %v744, %v740
        %v817 = vpack.c.b16 %v745, %v741
        %v818 = vpack.c.b16 %v750, %v746
        %v819 = vpack.c.b16 %v751, %v747
        %v820 = vpack.c.b16 %v752, %v748
        %v821 = vpack.c.b16 %v753, %v749
        %v822 = vpack.c.b16 %v758, %v754
        %v823 = vpack.c.b16 %v759, %v755
        %v824 = vpack.c.b16 %v760, %v756
        %v825 = vpack.c.b16 %v761, %v757
        %890 = vmatpush.bf16.msra.mxu0 %v790
        %891 = vmatpush.bf16.msra.mxu0 %v786
        %892 = vmatpush.bf16.msra.mxu0 %v782
        %893 = vmatpush.bf16.msra.mxu0 %v778
        %894 = vmatpush.bf16.msra.mxu0 %v774
        %895 = vmatpush.bf16.msra.mxu0 %v770
        %896 = vmatpush.bf16.msra.mxu0 %v766
        %897 = vmatpush.bf16.msra.mxu0 %v762
        %898 = vmatmul.bf16.gmra.mxu0 %v489
        %v899 = vpop.f32.mrf.mxu0
        %v900 = vadd.f32 %v562, %v899
        %v901 = vpop.f32.mrf.mxu0
        %v902 = vadd.f32 %v562, %v901
        %903 = vmatmul.bf16.gmra.mxu0 %v491
        %v904 = vpop.f32.mrf.mxu0
        %v905 = vadd.f32 %v562, %v904
        %v906 = vpop.f32.mrf.mxu0
        %v907 = vadd.f32 %v562, %v906
        %908 = vmatmul.bf16.gmra.mxu0 %v493
        %v909 = vpop.f32.mrf.mxu0
        %v910 = vadd.f32 %v562, %v909
        %v911 = vpop.f32.mrf.mxu0
        %v912 = vadd.f32 %v562, %v911
        %913 = vmatmul.bf16.gmra.mxu0 %v495
        %v914 = vpop.f32.mrf.mxu0
        %v915 = vadd.f32 %v562, %v914
        %v916 = vpop.f32.mrf.mxu0
        %v917 = vadd.f32 %v562, %v916
        %918 = vdwg.mxu0
        %919 = vmatpush.bf16.msra.mxu0 %v822
        %920 = vmatpush.bf16.msra.mxu0 %v818
        %921 = vmatpush.bf16.msra.mxu0 %v814
        %922 = vmatpush.bf16.msra.mxu0 %v810
        %923 = vmatpush.bf16.msra.mxu0 %v806
        %924 = vmatpush.bf16.msra.mxu0 %v802
        %925 = vmatpush.bf16.msra.mxu0 %v798
        %926 = vmatpush.bf16.msra.mxu0 %v794
        %927 = vmatmul.bf16.gmra.mxu0 %v490
        %v928 = vpop.f32.mrf.mxu0
        %v929 = vadd.f32 %v900, %v928
        %v930 = vpop.f32.mrf.mxu0
        %v931 = vadd.f32 %v902, %v930
        %932 = vmatmul.bf16.gmra.mxu0 %v492
        %v933 = vpop.f32.mrf.mxu0
        %v934 = vadd.f32 %v905, %v933
        %v935 = vpop.f32.mrf.mxu0
        %v936 = vadd.f32 %v907, %v935
        %937 = vmatmul.bf16.gmra.mxu0 %v494
        %v938 = vpop.f32.mrf.mxu0
        %v939 = vadd.f32 %v910, %v938
        %v940 = vpop.f32.mrf.mxu0
        %v941 = vadd.f32 %v912, %v940
        %942 = vmatmul.bf16.gmra.mxu0 %v496
        %v943 = vpop.f32.mrf.mxu0
        %v944 = vadd.f32 %v915, %v943
        %v945 = vpop.f32.mrf.mxu0
        %v946 = vadd.f32 %v917, %v945
        %947 = vdwg.mxu0
        %948 = vmatpush.bf16.msra.mxu0 %v791
        %949 = vmatpush.bf16.msra.mxu0 %v787
        %950 = vmatpush.bf16.msra.mxu0 %v783
        %951 = vmatpush.bf16.msra.mxu0 %v779
        %952 = vmatpush.bf16.msra.mxu0 %v775
        %953 = vmatpush.bf16.msra.mxu0 %v771
        %954 = vmatpush.bf16.msra.mxu0 %v767
        %955 = vmatpush.bf16.msra.mxu0 %v763
        %956 = vmatmul.bf16.gmra.mxu0 %v489
        %v957 = vpop.f32.mrf.mxu0
        %v958 = vadd.f32 %v563, %v957
        %v959 = vpop.f32.mrf.mxu0
        %v960 = vadd.f32 %v563, %v959
        %961 = vmatmul.bf16.gmra.mxu0 %v491
        %v962 = vpop.f32.mrf.mxu0
        %v963 = vadd.f32 %v563, %v962
        %v964 = vpop.f32.mrf.mxu0
        %v965 = vadd.f32 %v563, %v964
        %966 = vmatmul.bf16.gmra.mxu0 %v493
        %v967 = vpop.f32.mrf.mxu0
        %v968 = vadd.f32 %v563, %v967
        %v969 = vpop.f32.mrf.mxu0
        %v970 = vadd.f32 %v563, %v969
        %971 = vmatmul.bf16.gmra.mxu0 %v495
        %v972 = vpop.f32.mrf.mxu0
        %v973 = vadd.f32 %v563, %v972
        %v974 = vpop.f32.mrf.mxu0
        %v975 = vadd.f32 %v563, %v974
        %976 = vdwg.mxu0
        %977 = vmatpush.bf16.msra.mxu0 %v823
        %978 = vmatpush.bf16.msra.mxu0 %v819
        %979 = vmatpush.bf16.msra.mxu0 %v815
        %980 = vmatpush.bf16.msra.mxu0 %v811
        %981 = vmatpush.bf16.msra.mxu0 %v807
        %982 = vmatpush.bf16.msra.mxu0 %v803
        %983 = vmatpush.bf16.msra.mxu0 %v799
        %984 = vmatpush.bf16.msra.mxu0 %v795
        %985 = vmatmul.bf16.gmra.mxu0 %v490
        %v986 = vpop.f32.mrf.mxu0
        %v987 = vadd.f32 %v958, %v986
        %v988 = vpop.f32.mrf.mxu0
        %v989 = vadd.f32 %v960, %v988
        %990 = vmatmul.bf16.gmra.mxu0 %v492
        %v991 = vpop.f32.mrf.mxu0
        %v992 = vadd.f32 %v963, %v991
        %v993 = vpop.f32.mrf.mxu0
        %v994 = vadd.f32 %v965, %v993
        %995 = vmatmul.bf16.gmra.mxu0 %v494
        %v996 = vpop.f32.mrf.mxu0
        %v997 = vadd.f32 %v968, %v996
        %v998 = vpop.f32.mrf.mxu0
        %v999 = vadd.f32 %v970, %v998
        %1000 = vmatmul.bf16.gmra.mxu0 %v496
        %v1001 = vpop.f32.mrf.mxu0
        %v1002 = vadd.f32 %v973, %v1001
        %v1003 = vpop.f32.mrf.mxu0
        %v1004 = vadd.f32 %v975, %v1003
        %1005 = vdwg.mxu0
        %1006 = vmatpush.bf16.msra.mxu0 %v792
        %1007 = vmatpush.bf16.msra.mxu0 %v788
        %1008 = vmatpush.bf16.msra.mxu0 %v784
        %1009 = vmatpush.bf16.msra.mxu0 %v780
        %1010 = vmatpush.bf16.msra.mxu0 %v776
        %1011 = vmatpush.bf16.msra.mxu0 %v772
        %1012 = vmatpush.bf16.msra.mxu0 %v768
        %1013 = vmatpush.bf16.msra.mxu0 %v764
        %1014 = vmatmul.bf16.gmra.mxu0 %v489
        %v1015 = vpop.f32.mrf.mxu0
        %v1016 = vadd.f32 %v564, %v1015
        %v1017 = vpop.f32.mrf.mxu0
        %v1018 = vadd.f32 %v564, %v1017
        %1019 = vmatmul.bf16.gmra.mxu0 %v491
        %v1020 = vpop.f32.mrf.mxu0
        %v1021 = vadd.f32 %v564, %v1020
        %v1022 = vpop.f32.mrf.mxu0
        %v1023 = vadd.f32 %v564, %v1022
        %1024 = vmatmul.bf16.gmra.mxu0 %v493
        %v1025 = vpop.f32.mrf.mxu0
        %v1026 = vadd.f32 %v564, %v1025
        %v1027 = vpop.f32.mrf.mxu0
        %v1028 = vadd.f32 %v564, %v1027
        %1029 = vmatmul.bf16.gmra.mxu0 %v495
        %v1030 = vpop.f32.mrf.mxu0
        %v1031 = vadd.f32 %v564, %v1030
        %v1032 = vpop.f32.mrf.mxu0
        %v1033 = vadd.f32 %v564, %v1032
        %1034 = vdwg.mxu0
        %1035 = vmatpush.bf16.msra.mxu0 %v824
        %1036 = vmatpush.bf16.msra.mxu0 %v820
        %1037 = vmatpush.bf16.msra.mxu0 %v816
        %1038 = vmatpush.bf16.msra.mxu0 %v812
        %1039 = vmatpush.bf16.msra.mxu0 %v808
        %1040 = vmatpush.bf16.msra.mxu0 %v804
        %1041 = vmatpush.bf16.msra.mxu0 %v800
        %1042 = vmatpush.bf16.msra.mxu0 %v796
        %1043 = vmatmul.bf16.gmra.mxu0 %v490
        %v1044 = vpop.f32.mrf.mxu0
        %v1045 = vadd.f32 %v1016, %v1044
        %v1046 = vpop.f32.mrf.mxu0
        %v1047 = vadd.f32 %v1018, %v1046
        %1048 = vmatmul.bf16.gmra.mxu0 %v492
        %v1049 = vpop.f32.mrf.mxu0
        %v1050 = vadd.f32 %v1021, %v1049
        %v1051 = vpop.f32.mrf.mxu0
        %v1052 = vadd.f32 %v1023, %v1051
        %1053 = vmatmul.bf16.gmra.mxu0 %v494
        %v1054 = vpop.f32.mrf.mxu0
        %v1055 = vadd.f32 %v1026, %v1054
        %v1056 = vpop.f32.mrf.mxu0
        %v1057 = vadd.f32 %v1028, %v1056
        %1058 = vmatmul.bf16.gmra.mxu0 %v496
        %v1059 = vpop.f32.mrf.mxu0
        %v1060 = vadd.f32 %v1031, %v1059
        %v1061 = vpop.f32.mrf.mxu0
        %v1062 = vadd.f32 %v1033, %v1061
        %1063 = vdwg.mxu0
        %1064 = vmatpush.bf16.msra.mxu0 %v793
        %1065 = vmatpush.bf16.msra.mxu0 %v789
        %1066 = vmatpush.bf16.msra.mxu0 %v785
        %1067 = vmatpush.bf16.msra.mxu0 %v781
        %1068 = vmatpush.bf16.msra.mxu0 %v777
        %1069 = vmatpush.bf16.msra.mxu0 %v773
        %1070 = vmatpush.bf16.msra.mxu0 %v769
        %1071 = vmatpush.bf16.msra.mxu0 %v765
        %1072 = vmatmul.bf16.gmra.mxu0 %v489
        %v1073 = vpop.f32.mrf.mxu0
        %v1074 = vadd.f32 %v565, %v1073
        %v1075 = vpop.f32.mrf.mxu0
        %v1076 = vadd.f32 %v565, %v1075
        %1077 = vmatmul.bf16.gmra.mxu0 %v491
        %v1078 = vpop.f32.mrf.mxu0
        %v1079 = vadd.f32 %v565, %v1078
        %v1080 = vpop.f32.mrf.mxu0
        %v1081 = vadd.f32 %v565, %v1080
        %1082 = vmatmul.bf16.gmra.mxu0 %v493
        %v1083 = vpop.f32.mrf.mxu0
        %v1084 = vadd.f32 %v565, %v1083
        %v1085 = vpop.f32.mrf.mxu0
        %v1086 = vadd.f32 %v565, %v1085
        %1087 = vmatmul.bf16.gmra.mxu0 %v495
        %v1088 = vpop.f32.mrf.mxu0
        %v1089 = vadd.f32 %v565, %v1088
        %v1090 = vpop.f32.mrf.mxu0
        %v1091 = vadd.f32 %v565, %v1090
        %1092 = vdwg.mxu0
        %1093 = vmatpush.bf16.msra.mxu0 %v825
        %1094 = vmatpush.bf16.msra.mxu0 %v821
        %1095 = vmatpush.bf16.msra.mxu0 %v817
        %1096 = vmatpush.bf16.msra.mxu0 %v813
        %1097 = vmatpush.bf16.msra.mxu0 %v809
        %1098 = vmatpush.bf16.msra.mxu0 %v805
        %1099 = vmatpush.bf16.msra.mxu0 %v801
        %1100 = vmatpush.bf16.msra.mxu0 %v797
        %1101 = vmatmul.bf16.gmra.mxu0 %v490
        %v1102 = vpop.f32.mrf.mxu0
        %v1103 = vadd.f32 %v1074, %v1102
        %v1104 = vpop.f32.mrf.mxu0
        %v1105 = vadd.f32 %v1076, %v1104
        %1106 = vmatmul.bf16.gmra.mxu0 %v492
        %v1107 = vpop.f32.mrf.mxu0
        %v1108 = vadd.f32 %v1079, %v1107
        %v1109 = vpop.f32.mrf.mxu0
        %v1110 = vadd.f32 %v1081, %v1109
        %1111 = vmatmul.bf16.gmra.mxu0 %v494
        %v1112 = vpop.f32.mrf.mxu0
        %v1113 = vadd.f32 %v1084, %v1112
        %v1114 = vpop.f32.mrf.mxu0
        %v1115 = vadd.f32 %v1086, %v1114
        %1116 = vmatmul.bf16.gmra.mxu0 %v496
        %v1117 = vpop.f32.mrf.mxu0
        %v1118 = vadd.f32 %v1089, %v1117
        %v1119 = vpop.f32.mrf.mxu0
        %v1120 = vadd.f32 %v1091, %v1119
        %1121 = vdwg.mxu0
        %v1122 = vmax.f32 %v929, 0.0
        %v1123 = vmax.f32 %v987, 0.0
        %v1124 = vmax.f32 %v1045, 0.0
        %v1125 = vmax.f32 %v1103, 0.0
        %v1126 = vmax.f32 %v931, 0.0
        %v1127 = vmax.f32 %v989, 0.0
        %v1128 = vmax.f32 %v1047, 0.0
        %v1129 = vmax.f32 %v1105, 0.0
        %v1130 = vmax.f32 %v934, 0.0
        %v1131 = vmax.f32 %v992, 0.0
        %v1132 = vmax.f32 %v1050, 0.0
        %v1133 = vmax.f32 %v1108, 0.0
        %v1134 = vmax.f32 %v936, 0.0
        %v1135 = vmax.f32 %v994, 0.0
        %v1136 = vmax.f32 %v1052, 0.0
        %v1137 = vmax.f32 %v1110, 0.0
        %v1138 = vmax.f32 %v939, 0.0
        %v1139 = vmax.f32 %v997, 0.0
        %v1140 = vmax.f32 %v1055, 0.0
        %v1141 = vmax.f32 %v1113, 0.0
        %v1142 = vmax.f32 %v941, 0.0
        %v1143 = vmax.f32 %v999, 0.0
        %v1144 = vmax.f32 %v1057, 0.0
        %v1145 = vmax.f32 %v1115, 0.0
        %v1146 = vmax.f32 %v944, 0.0
        %v1147 = vmax.f32 %v1002, 0.0
        %v1148 = vmax.f32 %v1060, 0.0
        %v1149 = vmax.f32 %v1118, 0.0
        %v1150 = vmax.f32 %v946, 0.0
        %v1151 = vmax.f32 %v1004, 0.0
        %v1152 = vmax.f32 %v1062, 0.0
        %v1153 = vmax.f32 %v1120, 0.0
        %v1154 = vpack.c.bf16 %v1123, %v1122
        %v1155 = vpack.c.bf16 %v1125, %v1124
        %v1156 = vpack.c.bf16 %v1127, %v1126
        %v1157 = vpack.c.bf16 %v1129, %v1128
        %v1158 = vpack.c.bf16 %v1131, %v1130
        %v1159 = vpack.c.bf16 %v1133, %v1132
        %v1160 = vpack.c.bf16 %v1135, %v1134
        %v1161 = vpack.c.bf16 %v1137, %v1136
        %v1162 = vpack.c.bf16 %v1139, %v1138
        %v1163 = vpack.c.bf16 %v1141, %v1140
        %v1164 = vpack.c.bf16 %v1143, %v1142
        %v1165 = vpack.c.bf16 %v1145, %v1144
        %v1166 = vpack.c.bf16 %v1147, %v1146
        %v1167 = vpack.c.bf16 %v1149, %v1148
        %v1168 = vpack.c.bf16 %v1151, %v1150
        %v1169 = vpack.c.bf16 %v1153, %v1152
        %v1170 = vld [vmem:[%s5] sm:$0xff]
        %v1171 = vld [vmem:[%s5 + $0x8] sm:$0xff]
        %v1172 = vld [vmem:[%s5 + $0x10] sm:$0xff]
        %v1173 = vld [vmem:[%s5 + $0x18] sm:$0xff]
        %v1174 = vld [vmem:[%s5 + $0x20] sm:$0xff]
        %v1175 = vld [vmem:[%s5 + $0x28] sm:$0xff]
        %v1176 = vld [vmem:[%s5 + $0x30] sm:$0xff]
        %v1177 = vld [vmem:[%s5 + $0x38] sm:$0xff]
        %v1178 = vld [vmem:[%s5 + $0x40] sm:$0xff]
        %v1179 = vld [vmem:[%s5 + $0x48] sm:$0xff]
        %v1180 = vld [vmem:[%s5 + $0x50] sm:$0xff]
        %v1181 = vld [vmem:[%s5 + $0x58] sm:$0xff]
        %v1182 = vld [vmem:[%s5 + $0x60] sm:$0xff]
        %v1183 = vld [vmem:[%s5 + $0x68] sm:$0xff]
        %v1184 = vld [vmem:[%s5 + $0x70] sm:$0xff]
        %v1185 = vld [vmem:[%s5 + $0x78] sm:$0xff]
        %v1187 = vperm.slane %v354, 0
        %v1188 = vperm.slane %v354, 1
        %v1199 = vunpack.c.l.b16 %v1154
        %v1200 = vunpack.c.l.b16 %v1156
        %v1201 = vunpack.c.l.b16 %v1158
        %v1202 = vunpack.c.l.b16 %v1160
        %v1203 = vunpack.c.l.b16 %v1162
        %v1204 = vunpack.c.l.b16 %v1164
        %v1205 = vunpack.c.l.b16 %v1166
        %v1206 = vunpack.c.l.b16 %v1168
        %v1207 = vpack.c.b16 %v1200, %v1199
        %v1208 = vpack.c.b16 %v1202, %v1201
        %v1209 = vpack.c.b16 %v1204, %v1203
        %v1210 = vpack.c.b16 %v1206, %v1205
        %v1231 = vunpack.c.l.b16 %v1170
        %v1232 = vunpack.c.h.b16 %v1170
        %v1233 = vunpack.c.l.b16 %v1171
        %v1234 = vunpack.c.h.b16 %v1171
        %v1235 = vunpack.c.l.b16 %v1172
        %v1236 = vunpack.c.h.b16 %v1172
        %v1237 = vunpack.c.l.b16 %v1173
        %v1238 = vunpack.c.h.b16 %v1173
        %v1239 = vunpack.c.l.b16 %v1174
        %v1240 = vunpack.c.h.b16 %v1174
        %v1241 = vunpack.c.l.b16 %v1175
        %v1242 = vunpack.c.h.b16 %v1175
        %v1243 = vunpack.c.l.b16 %v1176
        %v1244 = vunpack.c.h.b16 %v1176
        %v1245 = vunpack.c.l.b16 %v1177
        %v1246 = vunpack.c.h.b16 %v1177
        %v1247 = vunpack.c.l.b16 %v1178
        %v1248 = vunpack.c.h.b16 %v1178
        %v1249 = vunpack.c.l.b16 %v1179
        %v1250 = vunpack.c.h.b16 %v1179
        %v1251 = vunpack.c.l.b16 %v1180
        %v1252 = vunpack.c.h.b16 %v1180
        %v1253 = vunpack.c.l.b16 %v1181
        %v1254 = vunpack.c.h.b16 %v1181
        %v1255 = vunpack.c.l.b16 %v1182
        %v1256 = vunpack.c.h.b16 %v1182
        %v1257 = vunpack.c.l.b16 %v1183
        %v1258 = vunpack.c.h.b16 %v1183
        %v1259 = vunpack.c.l.b16 %v1184
        %v1260 = vunpack.c.h.b16 %v1184
        %v1261 = vunpack.c.l.b16 %v1185
        %v1262 = vunpack.c.h.b16 %v1185
        %v1263 = vpack.c.b16 %v1233, %v1231
        %v1264 = vpack.c.b16 %v1234, %v1232
        %v1265 = vpack.c.b16 %v1237, %v1235
        %v1266 = vpack.c.b16 %v1238, %v1236
        %v1267 = vpack.c.b16 %v1241, %v1239
        %v1268 = vpack.c.b16 %v1242, %v1240
        %v1269 = vpack.c.b16 %v1245, %v1243
        %v1270 = vpack.c.b16 %v1246, %v1244
        %v1271 = vpack.c.b16 %v1249, %v1247
        %v1272 = vpack.c.b16 %v1250, %v1248
        %v1273 = vpack.c.b16 %v1253, %v1251
        %v1274 = vpack.c.b16 %v1254, %v1252
        %v1275 = vpack.c.b16 %v1257, %v1255
        %v1276 = vpack.c.b16 %v1258, %v1256
        %v1277 = vpack.c.b16 %v1261, %v1259
        %v1278 = vpack.c.b16 %v1262, %v1260
        %1295 = vmatpush.bf16.msra.mxu0 %v1277
        %1296 = vmatpush.bf16.msra.mxu0 %v1275
        %1297 = vmatpush.bf16.msra.mxu0 %v1273
        %1298 = vmatpush.bf16.msra.mxu0 %v1271
        %1299 = vmatpush.bf16.msra.mxu0 %v1269
        %1300 = vmatpush.bf16.msra.mxu0 %v1267
        %1301 = vmatpush.bf16.msra.mxu0 %v1265
        %1302 = vmatpush.bf16.msra.mxu0 %v1263
        %1303 = vmatmul.bf16.gmra.mxu0 %v1207
        %v1304 = vpop.f32.mrf.mxu0
        %v1305 = vadd.f32 %v1187, %v1304
        %v1306 = vpop.f32.mrf.mxu0
        %v1307 = vadd.f32 %v1187, %v1306
        %1308 = vmatmul.bf16.gmra.mxu0 %v1208
        %v1309 = vpop.f32.mrf.mxu0
        %v1310 = vadd.f32 %v1187, %v1309
        %v1311 = vpop.f32.mrf.mxu0
        %v1312 = vadd.f32 %v1187, %v1311
        %1313 = vmatmul.bf16.gmra.mxu0 %v1209
        %v1314 = vpop.f32.mrf.mxu0
        %v1315 = vadd.f32 %v1187, %v1314
        %v1316 = vpop.f32.mrf.mxu0
        %v1317 = vadd.f32 %v1187, %v1316
        %1318 = vmatmul.bf16.gmra.mxu0 %v1210
        %v1319 = vpop.f32.mrf.mxu0
        %v1320 = vadd.f32 %v1187, %v1319
        %v1321 = vpop.f32.mrf.mxu0
        %v1322 = vadd.f32 %v1187, %v1321
        %1323 = vdwg.mxu0
        %1324 = vmatpush.bf16.msra.mxu0 %v1278
        %1325 = vmatpush.bf16.msra.mxu0 %v1276
        %1326 = vmatpush.bf16.msra.mxu0 %v1274
        %1327 = vmatpush.bf16.msra.mxu0 %v1272
        %1328 = vmatpush.bf16.msra.mxu0 %v1270
        %1329 = vmatpush.bf16.msra.mxu0 %v1268
        %1330 = vmatpush.bf16.msra.mxu0 %v1266
        %1331 = vmatpush.bf16.msra.mxu0 %v1264
        %1332 = vmatmul.bf16.gmra.mxu0 %v1207
        %v1333 = vpop.f32.mrf.mxu0
        %v1334 = vadd.f32 %v1188, %v1333
        %v1335 = vpop.f32.mrf.mxu0
        %v1336 = vadd.f32 %v1188, %v1335
        %1337 = vmatmul.bf16.gmra.mxu0 %v1208
        %v1338 = vpop.f32.mrf.mxu0
        %v1339 = vadd.f32 %v1188, %v1338
        %v1340 = vpop.f32.mrf.mxu0
        %v1341 = vadd.f32 %v1188, %v1340
        %1342 = vmatmul.bf16.gmra.mxu0 %v1209
        %v1343 = vpop.f32.mrf.mxu0
        %v1344 = vadd.f32 %v1188, %v1343
        %v1345 = vpop.f32.mrf.mxu0
        %v1346 = vadd.f32 %v1188, %v1345
        %1347 = vmatmul.bf16.gmra.mxu0 %v1210
        %v1348 = vpop.f32.mrf.mxu0
        %v1349 = vadd.f32 %v1188, %v1348
        %v1350 = vpop.f32.mrf.mxu0
        %v1351 = vadd.f32 %v1188, %v1350
        %1352 = vdwg.mxu0
        %v1353 = vmax.f32 %v1305, 0.0
        %v1354 = vmax.f32 %v1334, 0.0
        %v1355 = vmax.f32 %v1307, 0.0
        %v1356 = vmax.f32 %v1336, 0.0
        %v1357 = vmax.f32 %v1310, 0.0
        %v1358 = vmax.f32 %v1339, 0.0
        %v1359 = vmax.f32 %v1312, 0.0
        %v1360 = vmax.f32 %v1341, 0.0
        %v1361 = vmax.f32 %v1315, 0.0
        %v1362 = vmax.f32 %v1344, 0.0
        %v1363 = vmax.f32 %v1317, 0.0
        %v1364 = vmax.f32 %v1346, 0.0
        %v1365 = vmax.f32 %v1320, 0.0
        %v1366 = vmax.f32 %v1349, 0.0
        %v1367 = vmax.f32 %v1322, 0.0
        %v1368 = vmax.f32 %v1351, 0.0
        %v1369 = vpack.c.bf16 %v1355, %v1353
        %v1370 = vpack.c.bf16 %v1356, %v1354
        %v1371 = vpack.c.bf16 %v1359, %v1357
        %v1372 = vpack.c.bf16 %v1360, %v1358
        %v1373 = vpack.c.bf16 %v1363, %v1361
        %v1374 = vpack.c.bf16 %v1364, %v1362
        %v1375 = vpack.c.bf16 %v1367, %v1365
        %v1376 = vpack.c.bf16 %v1368, %v1366
        %v1377 = vld [vmem:[%s7] sm:$0xf]
        %v1378 = vld [vmem:[%s7 + $0x4] sm:$0xf]
        %v1379 = vld [vmem:[%s7 + $0x8] sm:$0xf]
        %v1380 = vld [vmem:[%s7 + $0xc] sm:$0xf]
        %v1381 = vld [vmem:[%s7 + $0x10] sm:$0xf]
        %v1382 = vld [vmem:[%s7 + $0x14] sm:$0xf]
        %v1383 = vld [vmem:[%s7 + $0x18] sm:$0xf]
        %v1384 = vld [vmem:[%s7 + $0x1c] sm:$0xf]
        %v1385 = vld [vmem:[%s7 + $0x20] sm:$0xf]
        %v1386 = vld [vmem:[%s7 + $0x24] sm:$0xf]
        %v1387 = vld [vmem:[%s7 + $0x28] sm:$0xf]
        %v1388 = vld [vmem:[%s7 + $0x2c] sm:$0xf]
        %v1389 = vld [vmem:[%s7 + $0x30] sm:$0xf]
        %v1390 = vld [vmem:[%s7 + $0x34] sm:$0xf]
        %v1391 = vld [vmem:[%s7 + $0x38] sm:$0xf]
        %v1392 = vld [vmem:[%s7 + $0x3c] sm:$0xf]
        %v1393 = vld [vmem:[%s7 + $0x40] sm:$0xf]
        %v1394 = vld [vmem:[%s7 + $0x44] sm:$0xf]
        %v1395 = vld [vmem:[%s7 + $0x48] sm:$0xf]
        %v1396 = vld [vmem:[%s7 + $0x4c] sm:$0xf]
        %v1397 = vld [vmem:[%s7 + $0x50] sm:$0xf]
        %v1398 = vld [vmem:[%s7 + $0x54] sm:$0xf]
        %v1399 = vld [vmem:[%s7 + $0x58] sm:$0xf]
        %v1400 = vld [vmem:[%s7 + $0x5c] sm:$0xf]
        %v1401 = vld [vmem:[%s7 + $0x60] sm:$0xf]
        %v1402 = vld [vmem:[%s7 + $0x64] sm:$0xf]
        %v1403 = vld [vmem:[%s7 + $0x68] sm:$0xf]
        %v1404 = vld [vmem:[%s7 + $0x6c] sm:$0xf]
        %v1405 = vld [vmem:[%s7 + $0x70] sm:$0xf]
        %v1406 = vld [vmem:[%s7 + $0x74] sm:$0xf]
        %v1407 = vld [vmem:[%s7 + $0x78] sm:$0xf]
        %v1408 = vld [vmem:[%s7 + $0x7c] sm:$0xf]
        %v1410 = vperm.slane %v355, 0
        %v1444 = vunpack.c.l.b16 %v1377
        %v1445 = vunpack.c.l.b16 %v1378
        %v1446 = vunpack.c.l.b16 %v1379
        %v1447 = vunpack.c.l.b16 %v1380
        %v1448 = vunpack.c.l.b16 %v1381
        %v1449 = vunpack.c.l.b16 %v1382
        %v1450 = vunpack.c.l.b16 %v1383
        %v1451 = vunpack.c.l.b16 %v1384
        %v1452 = vunpack.c.l.b16 %v1385
        %v1453 = vunpack.c.l.b16 %v1386
        %v1454 = vunpack.c.l.b16 %v1387
        %v1455 = vunpack.c.l.b16 %v1388
        %v1456 = vunpack.c.l.b16 %v1389
        %v1457 = vunpack.c.l.b16 %v1390
        %v1458 = vunpack.c.l.b16 %v1391
        %v1459 = vunpack.c.l.b16 %v1392
        %v1460 = vunpack.c.l.b16 %v1393
        %v1461 = vunpack.c.l.b16 %v1394
        %v1462 = vunpack.c.l.b16 %v1395
        %v1463 = vunpack.c.l.b16 %v1396
        %v1464 = vunpack.c.l.b16 %v1397
        %v1465 = vunpack.c.l.b16 %v1398
        %v1466 = vunpack.c.l.b16 %v1399
        %v1467 = vunpack.c.l.b16 %v1400
        %v1468 = vunpack.c.l.b16 %v1401
        %v1469 = vunpack.c.l.b16 %v1402
        %v1470 = vunpack.c.l.b16 %v1403
        %v1471 = vunpack.c.l.b16 %v1404
        %v1472 = vunpack.c.l.b16 %v1405
        %v1473 = vunpack.c.l.b16 %v1406
        %v1474 = vunpack.c.l.b16 %v1407
        %v1475 = vunpack.c.l.b16 %v1408
        %v1476 = vpack.c.b16 %v1445, %v1444
        %v1477 = vpack.c.b16 %v1447, %v1446
        %v1478 = vpack.c.b16 %v1449, %v1448
        %v1479 = vpack.c.b16 %v1451, %v1450
        %v1480 = vpack.c.b16 %v1453, %v1452
        %v1481 = vpack.c.b16 %v1455, %v1454
        %v1482 = vpack.c.b16 %v1457, %v1456
        %v1483 = vpack.c.b16 %v1459, %v1458
        %v1484 = vpack.c.b16 %v1461, %v1460
        %v1485 = vpack.c.b16 %v1463, %v1462
        %v1486 = vpack.c.b16 %v1465, %v1464
        %v1487 = vpack.c.b16 %v1467, %v1466
        %v1488 = vpack.c.b16 %v1469, %v1468
        %v1489 = vpack.c.b16 %v1471, %v1470
        %v1490 = vpack.c.b16 %v1473, %v1472
        %v1491 = vpack.c.b16 %v1475, %v1474
        %1508 = vmatpush.bf16.msra.mxu0 %v1483
        %1509 = vmatpush.bf16.msra.mxu0 %v1482
        %1510 = vmatpush.bf16.msra.mxu0 %v1481
        %1511 = vmatpush.bf16.msra.mxu0 %v1480
        %1512 = vmatpush.bf16.msra.mxu0 %v1479
        %1513 = vmatpush.bf16.msra.mxu0 %v1478
        %1514 = vmatpush.bf16.msra.mxu0 %v1477
        %1515 = vmatpush.bf16.msra.mxu0 %v1476
        %1516 = vmatmul.bf16.gmra.mxu0 %v1369
        %v1517 = vpop.f32.mrf.mxu0
        %v1518 = vadd.f32 %v1410, %v1517
        %v1519 = vpop.f32.mrf.mxu0
        %v1520 = vadd.f32 %v1410, %v1519
        %1521 = vmatmul.bf16.gmra.mxu0 %v1371
        %v1522 = vpop.f32.mrf.mxu0
        %v1523 = vadd.f32 %v1410, %v1522
        %v1524 = vpop.f32.mrf.mxu0
        %v1525 = vadd.f32 %v1410, %v1524
        %1526 = vmatmul.bf16.gmra.mxu0 %v1373
        %v1527 = vpop.f32.mrf.mxu0
        %v1528 = vadd.f32 %v1410, %v1527
        %v1529 = vpop.f32.mrf.mxu0
        %v1530 = vadd.f32 %v1410, %v1529
        %1531 = vmatmul.bf16.gmra.mxu0 %v1375
        %v1532 = vpop.f32.mrf.mxu0
        %v1533 = vadd.f32 %v1410, %v1532
        %v1534 = vpop.f32.mrf.mxu0
        %v1535 = vadd.f32 %v1410, %v1534
        %1536 = vdwg.mxu0
        %1537 = vmatpush.bf16.msra.mxu0 %v1491
        %1538 = vmatpush.bf16.msra.mxu0 %v1490
        %1539 = vmatpush.bf16.msra.mxu0 %v1489
        %1540 = vmatpush.bf16.msra.mxu0 %v1488
        %1541 = vmatpush.bf16.msra.mxu0 %v1487
        %1542 = vmatpush.bf16.msra.mxu0 %v1486
        %1543 = vmatpush.bf16.msra.mxu0 %v1485
        %1544 = vmatpush.bf16.msra.mxu0 %v1484
        %1545 = vmatmul.bf16.gmra.mxu0 %v1370
        %v1546 = vpop.f32.mrf.mxu0
        %v1547 = vadd.f32 %v1518, %v1546
        %v1548 = vpop.f32.mrf.mxu0
        %v1549 = vadd.f32 %v1520, %v1548
        %1550 = vmatmul.bf16.gmra.mxu0 %v1372
        %v1551 = vpop.f32.mrf.mxu0
        %v1552 = vadd.f32 %v1523, %v1551
        %v1553 = vpop.f32.mrf.mxu0
        %v1554 = vadd.f32 %v1525, %v1553
        %1555 = vmatmul.bf16.gmra.mxu0 %v1374
        %v1556 = vpop.f32.mrf.mxu0
        %v1557 = vadd.f32 %v1528, %v1556
        %v1558 = vpop.f32.mrf.mxu0
        %v1559 = vadd.f32 %v1530, %v1558
        %1560 = vmatmul.bf16.gmra.mxu0 %v1376
        %v1561 = vpop.f32.mrf.mxu0
        %v1562 = vadd.f32 %v1533, %v1561
        %v1563 = vpop.f32.mrf.mxu0
        %v1564 = vadd.f32 %v1535, %v1563
        %1565 = vdwg.mxu0
        %v1566 = vmax.f32 %v1547, 0.0
        %v1567 = vmax.f32 %v1549, 0.0
        %v1568 = vmax.f32 %v1552, 0.0
        %v1569 = vmax.f32 %v1554, 0.0
        %v1570 = vmax.f32 %v1557, 0.0
        %v1571 = vmax.f32 %v1559, 0.0
        %v1572 = vmax.f32 %v1562, 0.0
        %v1573 = vmax.f32 %v1564, 0.0
        %vm1574 = vcmask 392192
        %1575 = vst.msk [vmem:[%s349] sm:$0xff] %vm1574, %v1566
        %1576 = vst.msk [vmem:[%s349 + $0x8] sm:$0xff] %vm1574, %v1567
        %1577 = vst.msk [vmem:[%s349 + $0x10] sm:$0xff] %vm1574, %v1568
        %1578 = vst.msk [vmem:[%s349 + $0x18] sm:$0xff] %vm1574, %v1569
        %1579 = vst.msk [vmem:[%s349 + $0x20] sm:$0xff] %vm1574, %v1570
        %1580 = vst.msk [vmem:[%s349 + $0x28] sm:$0xff] %vm1574, %v1571
        %1581 = vst.msk [vmem:[%s349 + $0x30] sm:$0xff] %vm1574, %v1572
        %1582 = vst.msk [vmem:[%s349 + $0x38] sm:$0xff] %vm1574, %v1573
        %v1583 = vld [vmem:[%s5] sm:$0xff]
        %v1584 = vld [vmem:[%s5 + $0x8] sm:$0xff]
        %v1585 = vld [vmem:[%s5 + $0x10] sm:$0xff]
        %v1586 = vld [vmem:[%s5 + $0x18] sm:$0xff]
        %v1587 = vld [vmem:[%s5 + $0x20] sm:$0xff]
        %v1588 = vld [vmem:[%s5 + $0x28] sm:$0xff]
        %v1589 = vld [vmem:[%s5 + $0x30] sm:$0xff]
        %v1590 = vld [vmem:[%s5 + $0x38] sm:$0xff]
        %v1591 = vld [vmem:[%s5 + $0x40] sm:$0xff]
        %v1592 = vld [vmem:[%s5 + $0x48] sm:$0xff]
        %v1593 = vld [vmem:[%s5 + $0x50] sm:$0xff]
        %v1594 = vld [vmem:[%s5 + $0x58] sm:$0xff]
        %v1595 = vld [vmem:[%s5 + $0x60] sm:$0xff]
        %v1596 = vld [vmem:[%s5 + $0x68] sm:$0xff]
        %v1597 = vld [vmem:[%s5 + $0x70] sm:$0xff]
        %v1598 = vld [vmem:[%s5 + $0x78] sm:$0xff]
        %v1599 = vunpack.c.h.b16 %v1154
        %v1600 = vunpack.c.h.b16 %v1156
        %v1601 = vunpack.c.h.b16 %v1158
        %v1602 = vunpack.c.h.b16 %v1160
        %v1603 = vunpack.c.h.b16 %v1162
        %v1604 = vunpack.c.h.b16 %v1164
        %v1605 = vunpack.c.h.b16 %v1166
        %v1606 = vunpack.c.h.b16 %v1168
        %v1607 = vpack.c.b16 %v1600, %v1599
        %v1608 = vpack.c.b16 %v1602, %v1601
        %v1609 = vpack.c.b16 %v1604, %v1603
        %v1610 = vpack.c.b16 %v1606, %v1605
        %v1631 = vunpack.c.l.b16 %v1583
        %v1632 = vunpack.c.h.b16 %v1583
        %v1633 = vunpack.c.l.b16 %v1584
        %v1634 = vunpack.c.h.b16 %v1584
        %v1635 = vunpack.c.l.b16 %v1585
        %v1636 = vunpack.c.h.b16 %v1585
        %v1637 = vunpack.c.l.b16 %v1586
        %v1638 = vunpack.c.h.b16 %v1586
        %v1639 = vunpack.c.l.b16 %v1587
        %v1640 = vunpack.c.h.b16 %v1587
        %v1641 = vunpack.c.l.b16 %v1588
        %v1642 = vunpack.c.h.b16 %v1588
        %v1643 = vunpack.c.l.b16 %v1589
        %v1644 = vunpack.c.h.b16 %v1589
        %v1645 = vunpack.c.l.b16 %v1590
        %v1646 = vunpack.c.h.b16 %v1590
        %v1647 = vunpack.c.l.b16 %v1591
        %v1648 = vunpack.c.h.b16 %v1591
        %v1649 = vunpack.c.l.b16 %v1592
        %v1650 = vunpack.c.h.b16 %v1592
        %v1651 = vunpack.c.l.b16 %v1593
        %v1652 = vunpack.c.h.b16 %v1593
        %v1653 = vunpack.c.l.b16 %v1594
        %v1654 = vunpack.c.h.b16 %v1594
        %v1655 = vunpack.c.l.b16 %v1595
        %v1656 = vunpack.c.h.b16 %v1595
        %v1657 = vunpack.c.l.b16 %v1596
        %v1658 = vunpack.c.h.b16 %v1596
        %v1659 = vunpack.c.l.b16 %v1597
        %v1660 = vunpack.c.h.b16 %v1597
        %v1661 = vunpack.c.l.b16 %v1598
        %v1662 = vunpack.c.h.b16 %v1598
        %v1663 = vpack.c.b16 %v1633, %v1631
        %v1664 = vpack.c.b16 %v1634, %v1632
        %v1665 = vpack.c.b16 %v1637, %v1635
        %v1666 = vpack.c.b16 %v1638, %v1636
        %v1667 = vpack.c.b16 %v1641, %v1639
        %v1668 = vpack.c.b16 %v1642, %v1640
        %v1669 = vpack.c.b16 %v1645, %v1643
        %v1670 = vpack.c.b16 %v1646, %v1644
        %v1671 = vpack.c.b16 %v1649, %v1647
        %v1672 = vpack.c.b16 %v1650, %v1648
        %v1673 = vpack.c.b16 %v1653, %v1651
        %v1674 = vpack.c.b16 %v1654, %v1652
        %v1675 = vpack.c.b16 %v1657, %v1655
        %v1676 = vpack.c.b16 %v1658, %v1656
        %v1677 = vpack.c.b16 %v1661, %v1659
        %v1678 = vpack.c.b16 %v1662, %v1660
        %1695 = vmatpush.bf16.msra.mxu0 %v1677
        %1696 = vmatpush.bf16.msra.mxu0 %v1675
        %1697 = vmatpush.bf16.msra.mxu0 %v1673
        %1698 = vmatpush.bf16.msra.mxu0 %v1671
        %1699 = vmatpush.bf16.msra.mxu0 %v1669
        %1700 = vmatpush.bf16.msra.mxu0 %v1667
        %1701 = vmatpush.bf16.msra.mxu0 %v1665
        %1702 = vmatpush.bf16.msra.mxu0 %v1663
        %1703 = vmatmul.bf16.gmra.mxu0 %v1607
        %v1704 = vpop.f32.mrf.mxu0
        %v1705 = vadd.f32 %v1187, %v1704
        %v1706 = vpop.f32.mrf.mxu0
        %v1707 = vadd.f32 %v1187, %v1706
        %1708 = vmatmul.bf16.gmra.mxu0 %v1608
        %v1709 = vpop.f32.mrf.mxu0
        %v1710 = vadd.f32 %v1187, %v1709
        %v1711 = vpop.f32.mrf.mxu0
        %v1712 = vadd.f32 %v1187, %v1711
        %1713 = vmatmul.bf16.gmra.mxu0 %v1609
        %v1714 = vpop.f32.mrf.mxu0
        %v1715 = vadd.f32 %v1187, %v1714
        %v1716 = vpop.f32.mrf.mxu0
        %v1717 = vadd.f32 %v1187, %v1716
        %1718 = vmatmul.bf16.gmra.mxu0 %v1610
        %v1719 = vpop.f32.mrf.mxu0
        %v1720 = vadd.f32 %v1187, %v1719
        %v1721 = vpop.f32.mrf.mxu0
        %v1722 = vadd.f32 %v1187, %v1721
        %1723 = vdwg.mxu0
        %1724 = vmatpush.bf16.msra.mxu0 %v1678
        %1725 = vmatpush.bf16.msra.mxu0 %v1676
        %1726 = vmatpush.bf16.msra.mxu0 %v1674
        %1727 = vmatpush.bf16.msra.mxu0 %v1672
        %1728 = vmatpush.bf16.msra.mxu0 %v1670
        %1729 = vmatpush.bf16.msra.mxu0 %v1668
        %1730 = vmatpush.bf16.msra.mxu0 %v1666
        %1731 = vmatpush.bf16.msra.mxu0 %v1664
        %1732 = vmatmul.bf16.gmra.mxu0 %v1607
        %v1733 = vpop.f32.mrf.mxu0
        %v1734 = vadd.f32 %v1188, %v1733
        %v1735 = vpop.f32.mrf.mxu0
        %v1736 = vadd.f32 %v1188, %v1735
        %1737 = vmatmul.bf16.gmra.mxu0 %v1608
        %v1738 = vpop.f32.mrf.mxu0
        %v1739 = vadd.f32 %v1188, %v1738
        %v1740 = vpop.f32.mrf.mxu0
        %v1741 = vadd.f32 %v1188, %v1740
        %1742 = vmatmul.bf16.gmra.mxu0 %v1609
        %v1743 = vpop.f32.mrf.mxu0
        %v1744 = vadd.f32 %v1188, %v1743
        %v1745 = vpop.f32.mrf.mxu0
        %v1746 = vadd.f32 %v1188, %v1745
        %1747 = vmatmul.bf16.gmra.mxu0 %v1610
        %v1748 = vpop.f32.mrf.mxu0
        %v1749 = vadd.f32 %v1188, %v1748
        %v1750 = vpop.f32.mrf.mxu0
        %v1751 = vadd.f32 %v1188, %v1750
        %1752 = vdwg.mxu0
        %v1753 = vmax.f32 %v1705, 0.0
        %v1754 = vmax.f32 %v1734, 0.0
        %v1755 = vmax.f32 %v1707, 0.0
        %v1756 = vmax.f32 %v1736, 0.0
        %v1757 = vmax.f32 %v1710, 0.0
        %v1758 = vmax.f32 %v1739, 0.0
        %v1759 = vmax.f32 %v1712, 0.0
        %v1760 = vmax.f32 %v1741, 0.0
        %v1761 = vmax.f32 %v1715, 0.0
        %v1762 = vmax.f32 %v1744, 0.0
        %v1763 = vmax.f32 %v1717, 0.0
        %v1764 = vmax.f32 %v1746, 0.0
        %v1765 = vmax.f32 %v1720, 0.0
        %v1766 = vmax.f32 %v1749, 0.0
        %v1767 = vmax.f32 %v1722, 0.0
        %v1768 = vmax.f32 %v1751, 0.0
        %v1769 = vpack.c.bf16 %v1755, %v1753
        %v1770 = vpack.c.bf16 %v1756, %v1754
        %v1771 = vpack.c.bf16 %v1759, %v1757
        %v1772 = vpack.c.bf16 %v1760, %v1758
        %v1773 = vpack.c.bf16 %v1763, %v1761
        %v1774 = vpack.c.bf16 %v1764, %v1762
        %v1775 = vpack.c.bf16 %v1767, %v1765
        %v1776 = vpack.c.bf16 %v1768, %v1766
        %v1777 = vld [vmem:[%s7] sm:$0xf]
        %v1778 = vld [vmem:[%s7 + $0x4] sm:$0xf]
        %v1779 = vld [vmem:[%s7 + $0x8] sm:$0xf]
        %v1780 = vld [vmem:[%s7 + $0xc] sm:$0xf]
        %v1781 = vld [vmem:[%s7 + $0x10] sm:$0xf]
        %v1782 = vld [vmem:[%s7 + $0x14] sm:$0xf]
        %v1783 = vld [vmem:[%s7 + $0x18] sm:$0xf]
        %v1784 = vld [vmem:[%s7 + $0x1c] sm:$0xf]
        %v1785 = vld [vmem:[%s7 + $0x20] sm:$0xf]
        %v1786 = vld [vmem:[%s7 + $0x24] sm:$0xf]
        %v1787 = vld [vmem:[%s7 + $0x28] sm:$0xf]
        %v1788 = vld [vmem:[%s7 + $0x2c] sm:$0xf]
        %v1789 = vld [vmem:[%s7 + $0x30] sm:$0xf]
        %v1790 = vld [vmem:[%s7 + $0x34] sm:$0xf]
        %v1791 = vld [vmem:[%s7 + $0x38] sm:$0xf]
        %v1792 = vld [vmem:[%s7 + $0x3c] sm:$0xf]
        %v1793 = vld [vmem:[%s7 + $0x40] sm:$0xf]
        %v1794 = vld [vmem:[%s7 + $0x44] sm:$0xf]
        %v1795 = vld [vmem:[%s7 + $0x48] sm:$0xf]
        %v1796 = vld [vmem:[%s7 + $0x4c] sm:$0xf]
        %v1797 = vld [vmem:[%s7 + $0x50] sm:$0xf]
        %v1798 = vld [vmem:[%s7 + $0x54] sm:$0xf]
        %v1799 = vld [vmem:[%s7 + $0x58] sm:$0xf]
        %v1800 = vld [vmem:[%s7 + $0x5c] sm:$0xf]
        %v1801 = vld [vmem:[%s7 + $0x60] sm:$0xf]
        %v1802 = vld [vmem:[%s7 + $0x64] sm:$0xf]
        %v1803 = vld [vmem:[%s7 + $0x68] sm:$0xf]
        %v1804 = vld [vmem:[%s7 + $0x6c] sm:$0xf]
        %v1805 = vld [vmem:[%s7 + $0x70] sm:$0xf]
        %v1806 = vld [vmem:[%s7 + $0x74] sm:$0xf]
        %v1807 = vld [vmem:[%s7 + $0x78] sm:$0xf]
        %v1808 = vld [vmem:[%s7 + $0x7c] sm:$0xf]
        %v1841 = vunpack.c.l.b16 %v1777
        %v1842 = vunpack.c.l.b16 %v1778
        %v1843 = vunpack.c.l.b16 %v1779
        %v1844 = vunpack.c.l.b16 %v1780
        %v1845 = vunpack.c.l.b16 %v1781
        %v1846 = vunpack.c.l.b16 %v1782
        %v1847 = vunpack.c.l.b16 %v1783
        %v1848 = vunpack.c.l.b16 %v1784
        %v1849 = vunpack.c.l.b16 %v1785
        %v1850 = vunpack.c.l.b16 %v1786
        %v1851 = vunpack.c.l.b16 %v1787
        %v1852 = vunpack.c.l.b16 %v1788
        %v1853 = vunpack.c.l.b16 %v1789
        %v1854 = vunpack.c.l.b16 %v1790
        %v1855 = vunpack.c.l.b16 %v1791
        %v1856 = vunpack.c.l.b16 %v1792
        %v1857 = vunpack.c.l.b16 %v1793
        %v1858 = vunpack.c.l.b16 %v1794
        %v1859 = vunpack.c.l.b16 %v1795
        %v1860 = vunpack.c.l.b16 %v1796
        %v1861 = vunpack.c.l.b16 %v1797
        %v1862 = vunpack.c.l.b16 %v1798
        %v1863 = vunpack.c.l.b16 %v1799
        %v1864 = vunpack.c.l.b16 %v1800
        %v1865 = vunpack.c.l.b16 %v1801
        %v1866 = vunpack.c.l.b16 %v1802
        %v1867 = vunpack.c.l.b16 %v1803
        %v1868 = vunpack.c.l.b16 %v1804
        %v1869 = vunpack.c.l.b16 %v1805
        %v1870 = vunpack.c.l.b16 %v1806
        %v1871 = vunpack.c.l.b16 %v1807
        %v1872 = vunpack.c.l.b16 %v1808
        %v1873 = vpack.c.b16 %v1842, %v1841
        %v1874 = vpack.c.b16 %v1844, %v1843
        %v1875 = vpack.c.b16 %v1846, %v1845
        %v1876 = vpack.c.b16 %v1848, %v1847
        %v1877 = vpack.c.b16 %v1850, %v1849
        %v1878 = vpack.c.b16 %v1852, %v1851
        %v1879 = vpack.c.b16 %v1854, %v1853
        %v1880 = vpack.c.b16 %v1856, %v1855
        %v1881 = vpack.c.b16 %v1858, %v1857
        %v1882 = vpack.c.b16 %v1860, %v1859
        %v1883 = vpack.c.b16 %v1862, %v1861
        %v1884 = vpack.c.b16 %v1864, %v1863
        %v1885 = vpack.c.b16 %v1866, %v1865
        %v1886 = vpack.c.b16 %v1868, %v1867
        %v1887 = vpack.c.b16 %v1870, %v1869
        %v1888 = vpack.c.b16 %v1872, %v1871
        %1905 = vmatpush.bf16.msra.mxu0 %v1880
        %1906 = vmatpush.bf16.msra.mxu0 %v1879
        %1907 = vmatpush.bf16.msra.mxu0 %v1878
        %1908 = vmatpush.bf16.msra.mxu0 %v1877
        %1909 = vmatpush.bf16.msra.mxu0 %v1876
        %1910 = vmatpush.bf16.msra.mxu0 %v1875
        %1911 = vmatpush.bf16.msra.mxu0 %v1874
        %1912 = vmatpush.bf16.msra.mxu0 %v1873
        %1913 = vmatmul.bf16.gmra.mxu0 %v1769
        %v1914 = vpop.f32.mrf.mxu0
        %v1915 = vadd.f32 %v1410, %v1914
        %v1916 = vpop.f32.mrf.mxu0
        %v1917 = vadd.f32 %v1410, %v1916
        %1918 = vmatmul.bf16.gmra.mxu0 %v1771
        %v1919 = vpop.f32.mrf.mxu0
        %v1920 = vadd.f32 %v1410, %v1919
        %v1921 = vpop.f32.mrf.mxu0
        %v1922 = vadd.f32 %v1410, %v1921
        %1923 = vmatmul.bf16.gmra.mxu0 %v1773
        %v1924 = vpop.f32.mrf.mxu0
        %v1925 = vadd.f32 %v1410, %v1924
        %v1926 = vpop.f32.mrf.mxu0
        %v1927 = vadd.f32 %v1410, %v1926
        %1928 = vmatmul.bf16.gmra.mxu0 %v1775
        %v1929 = vpop.f32.mrf.mxu0
        %v1930 = vadd.f32 %v1410, %v1929
        %v1931 = vpop.f32.mrf.mxu0
        %v1932 = vadd.f32 %v1410, %v1931
        %1933 = vdwg.mxu0
        %1934 = vmatpush.bf16.msra.mxu0 %v1888
        %1935 = vmatpush.bf16.msra.mxu0 %v1887
        %1936 = vmatpush.bf16.msra.mxu0 %v1886
        %1937 = vmatpush.bf16.msra.mxu0 %v1885
        %1938 = vmatpush.bf16.msra.mxu0 %v1884
        %1939 = vmatpush.bf16.msra.mxu0 %v1883
        %1940 = vmatpush.bf16.msra.mxu0 %v1882
        %1941 = vmatpush.bf16.msra.mxu0 %v1881
        %1942 = vmatmul.bf16.gmra.mxu0 %v1770
        %v1943 = vpop.f32.mrf.mxu0
        %v1944 = vadd.f32 %v1915, %v1943
        %v1945 = vpop.f32.mrf.mxu0
        %v1946 = vadd.f32 %v1917, %v1945
        %1947 = vmatmul.bf16.gmra.mxu0 %v1772
        %v1948 = vpop.f32.mrf.mxu0
        %v1949 = vadd.f32 %v1920, %v1948
        %v1950 = vpop.f32.mrf.mxu0
        %v1951 = vadd.f32 %v1922, %v1950
        %1952 = vmatmul.bf16.gmra.mxu0 %v1774
        %v1953 = vpop.f32.mrf.mxu0
        %v1954 = vadd.f32 %v1925, %v1953
        %v1955 = vpop.f32.mrf.mxu0
        %v1956 = vadd.f32 %v1927, %v1955
        %1957 = vmatmul.bf16.gmra.mxu0 %v1776
        %v1958 = vpop.f32.mrf.mxu0
        %v1959 = vadd.f32 %v1930, %v1958
        %v1960 = vpop.f32.mrf.mxu0
        %v1961 = vadd.f32 %v1932, %v1960
        %1962 = vdwg.mxu0
        %v1963 = vmax.f32 %v1944, 0.0
        %v1964 = vmax.f32 %v1946, 0.0
        %v1965 = vmax.f32 %v1949, 0.0
        %v1966 = vmax.f32 %v1951, 0.0
        %v1967 = vmax.f32 %v1954, 0.0
        %v1968 = vmax.f32 %v1956, 0.0
        %v1969 = vmax.f32 %v1959, 0.0
        %v1970 = vmax.f32 %v1961, 0.0
        %1971 = vst.msk [vmem:[%s349 + $0x40] sm:$0xff] %vm1574, %v1963
        %1972 = vst.msk [vmem:[%s349 + $0x48] sm:$0xff] %vm1574, %v1964
        %1973 = vst.msk [vmem:[%s349 + $0x50] sm:$0xff] %vm1574, %v1965
        %1974 = vst.msk [vmem:[%s349 + $0x58] sm:$0xff] %vm1574, %v1966
        %1975 = vst.msk [vmem:[%s349 + $0x60] sm:$0xff] %vm1574, %v1967
        %1976 = vst.msk [vmem:[%s349 + $0x68] sm:$0xff] %vm1574, %v1968
        %1977 = vst.msk [vmem:[%s349 + $0x70] sm:$0xff] %vm1574, %v1969
        %1978 = vst.msk [vmem:[%s349 + $0x78] sm:$0xff] %vm1574, %v1970
        %v1979 = vld [vmem:[%s5] sm:$0xff]
        %v1980 = vld [vmem:[%s5 + $0x8] sm:$0xff]
        %v1981 = vld [vmem:[%s5 + $0x10] sm:$0xff]
        %v1982 = vld [vmem:[%s5 + $0x18] sm:$0xff]
        %v1983 = vld [vmem:[%s5 + $0x20] sm:$0xff]
        %v1984 = vld [vmem:[%s5 + $0x28] sm:$0xff]
        %v1985 = vld [vmem:[%s5 + $0x30] sm:$0xff]
        %v1986 = vld [vmem:[%s5 + $0x38] sm:$0xff]
        %v1987 = vld [vmem:[%s5 + $0x40] sm:$0xff]
        %v1988 = vld [vmem:[%s5 + $0x48] sm:$0xff]
        %v1989 = vld [vmem:[%s5 + $0x50] sm:$0xff]
        %v1990 = vld [vmem:[%s5 + $0x58] sm:$0xff]
        %v1991 = vld [vmem:[%s5 + $0x60] sm:$0xff]
        %v1992 = vld [vmem:[%s5 + $0x68] sm:$0xff]
        %v1993 = vld [vmem:[%s5 + $0x70] sm:$0xff]
        %v1994 = vld [vmem:[%s5 + $0x78] sm:$0xff]
        %v2003 = vunpack.c.l.b16 %v1155
        %v2004 = vunpack.c.l.b16 %v1157
        %v2005 = vunpack.c.l.b16 %v1159
        %v2006 = vunpack.c.l.b16 %v1161
        %v2007 = vunpack.c.l.b16 %v1163
        %v2008 = vunpack.c.l.b16 %v1165
        %v2009 = vunpack.c.l.b16 %v1167
        %v2010 = vunpack.c.l.b16 %v1169
        %v2011 = vpack.c.b16 %v2004, %v2003
        %v2012 = vpack.c.b16 %v2006, %v2005
        %v2013 = vpack.c.b16 %v2008, %v2007
        %v2014 = vpack.c.b16 %v2010, %v2009
        %v2035 = vunpack.c.l.b16 %v1979
        %v2036 = vunpack.c.h.b16 %v1979
        %v2037 = vunpack.c.l.b16 %v1980
        %v2038 = vunpack.c.h.b16 %v1980
        %v2039 = vunpack.c.l.b16 %v1981
        %v2040 = vunpack.c.h.b16 %v1981
        %v2041 = vunpack.c.l.b16 %v1982
        %v2042 = vunpack.c.h.b16 %v1982
        %v2043 = vunpack.c.l.b16 %v1983
        %v2044 = vunpack.c.h.b16 %v1983
        %v2045 = vunpack.c.l.b16 %v1984
        %v2046 = vunpack.c.h.b16 %v1984
        %v2047 = vunpack.c.l.b16 %v1985
        %v2048 = vunpack.c.h.b16 %v1985
        %v2049 = vunpack.c.l.b16 %v1986
        %v2050 = vunpack.c.h.b16 %v1986
        %v2051 = vunpack.c.l.b16 %v1987
        %v2052 = vunpack.c.h.b16 %v1987
        %v2053 = vunpack.c.l.b16 %v1988
        %v2054 = vunpack.c.h.b16 %v1988
        %v2055 = vunpack.c.l.b16 %v1989
        %v2056 = vunpack.c.h.b16 %v1989
        %v2057 = vunpack.c.l.b16 %v1990
        %v2058 = vunpack.c.h.b16 %v1990
        %v2059 = vunpack.c.l.b16 %v1991
        %v2060 = vunpack.c.h.b16 %v1991
        %v2061 = vunpack.c.l.b16 %v1992
        %v2062 = vunpack.c.h.b16 %v1992
        %v2063 = vunpack.c.l.b16 %v1993
        %v2064 = vunpack.c.h.b16 %v1993
        %v2065 = vunpack.c.l.b16 %v1994
        %v2066 = vunpack.c.h.b16 %v1994
        %v2067 = vpack.c.b16 %v2037, %v2035
        %v2068 = vpack.c.b16 %v2038, %v2036
        %v2069 = vpack.c.b16 %v2041, %v2039
        %v2070 = vpack.c.b16 %v2042, %v2040
        %v2071 = vpack.c.b16 %v2045, %v2043
        %v2072 = vpack.c.b16 %v2046, %v2044
        %v2073 = vpack.c.b16 %v2049, %v2047
        %v2074 = vpack.c.b16 %v2050, %v2048
        %v2075 = vpack.c.b16 %v2053, %v2051
        %v2076 = vpack.c.b16 %v2054, %v2052
        %v2077 = vpack.c.b16 %v2057, %v2055
        %v2078 = vpack.c.b16 %v2058, %v2056
        %v2079 = vpack.c.b16 %v2061, %v2059
        %v2080 = vpack.c.b16 %v2062, %v2060
        %v2081 = vpack.c.b16 %v2065, %v2063
        %v2082 = vpack.c.b16 %v2066, %v2064
        %2099 = vmatpush.bf16.msra.mxu0 %v2081
        %2100 = vmatpush.bf16.msra.mxu0 %v2079
        %2101 = vmatpush.bf16.msra.mxu0 %v2077
        %2102 = vmatpush.bf16.msra.mxu0 %v2075
        %2103 = vmatpush.bf16.msra.mxu0 %v2073
        %2104 = vmatpush.bf16.msra.mxu0 %v2071
        %2105 = vmatpush.bf16.msra.mxu0 %v2069
        %2106 = vmatpush.bf16.msra.mxu0 %v2067
        %2107 = vmatmul.bf16.gmra.mxu0 %v2011
        %v2108 = vpop.f32.mrf.mxu0
        %v2109 = vadd.f32 %v1187, %v2108
        %v2110 = vpop.f32.mrf.mxu0
        %v2111 = vadd.f32 %v1187, %v2110
        %2112 = vmatmul.bf16.gmra.mxu0 %v2012
        %v2113 = vpop.f32.mrf.mxu0
        %v2114 = vadd.f32 %v1187, %v2113
        %v2115 = vpop.f32.mrf.mxu0
        %v2116 = vadd.f32 %v1187, %v2115
        %2117 = vmatmul.bf16.gmra.mxu0 %v2013
        %v2118 = vpop.f32.mrf.mxu0
        %v2119 = vadd.f32 %v1187, %v2118
        %v2120 = vpop.f32.mrf.mxu0
        %v2121 = vadd.f32 %v1187, %v2120
        %2122 = vmatmul.bf16.gmra.mxu0 %v2014
        %v2123 = vpop.f32.mrf.mxu0
        %v2124 = vadd.f32 %v1187, %v2123
        %v2125 = vpop.f32.mrf.mxu0
        %v2126 = vadd.f32 %v1187, %v2125
        %2127 = vdwg.mxu0
        %2128 = vmatpush.bf16.msra.mxu0 %v2082
        %2129 = vmatpush.bf16.msra.mxu0 %v2080
        %2130 = vmatpush.bf16.msra.mxu0 %v2078
        %2131 = vmatpush.bf16.msra.mxu0 %v2076
        %2132 = vmatpush.bf16.msra.mxu0 %v2074
        %2133 = vmatpush.bf16.msra.mxu0 %v2072
        %2134 = vmatpush.bf16.msra.mxu0 %v2070
        %2135 = vmatpush.bf16.msra.mxu0 %v2068
        %2136 = vmatmul.bf16.gmra.mxu0 %v2011
        %v2137 = vpop.f32.mrf.mxu0
        %v2138 = vadd.f32 %v1188, %v2137
        %v2139 = vpop.f32.mrf.mxu0
        %v2140 = vadd.f32 %v1188, %v2139
        %2141 = vmatmul.bf16.gmra.mxu0 %v2012
        %v2142 = vpop.f32.mrf.mxu0
        %v2143 = vadd.f32 %v1188, %v2142
        %v2144 = vpop.f32.mrf.mxu0
        %v2145 = vadd.f32 %v1188, %v2144
        %2146 = vmatmul.bf16.gmra.mxu0 %v2013
        %v2147 = vpop.f32.mrf.mxu0
        %v2148 = vadd.f32 %v1188, %v2147
        %v2149 = vpop.f32.mrf.mxu0
        %v2150 = vadd.f32 %v1188, %v2149
        %2151 = vmatmul.bf16.gmra.mxu0 %v2014
        %v2152 = vpop.f32.mrf.mxu0
        %v2153 = vadd.f32 %v1188, %v2152
        %v2154 = vpop.f32.mrf.mxu0
        %v2155 = vadd.f32 %v1188, %v2154
        %2156 = vdwg.mxu0
        %v2157 = vmax.f32 %v2109, 0.0
        %v2158 = vmax.f32 %v2138, 0.0
        %v2159 = vmax.f32 %v2111, 0.0
        %v2160 = vmax.f32 %v2140, 0.0
        %v2161 = vmax.f32 %v2114, 0.0
        %v2162 = vmax.f32 %v2143, 0.0
        %v2163 = vmax.f32 %v2116, 0.0
        %v2164 = vmax.f32 %v2145, 0.0
        %v2165 = vmax.f32 %v2119, 0.0
        %v2166 = vmax.f32 %v2148, 0.0
        %v2167 = vmax.f32 %v2121, 0.0
        %v2168 = vmax.f32 %v2150, 0.0
        %v2169 = vmax.f32 %v2124, 0.0
        %v2170 = vmax.f32 %v2153, 0.0
        %v2171 = vmax.f32 %v2126, 0.0
        %v2172 = vmax.f32 %v2155, 0.0
        %v2173 = vpack.c.bf16 %v2159, %v2157
        %v2174 = vpack.c.bf16 %v2160, %v2158
        %v2175 = vpack.c.bf16 %v2163, %v2161
        %v2176 = vpack.c.bf16 %v2164, %v2162
        %v2177 = vpack.c.bf16 %v2167, %v2165
        %v2178 = vpack.c.bf16 %v2168, %v2166
        %v2179 = vpack.c.bf16 %v2171, %v2169
        %v2180 = vpack.c.bf16 %v2172, %v2170
        %v2181 = vld [vmem:[%s7] sm:$0xf]
        %v2182 = vld [vmem:[%s7 + $0x4] sm:$0xf]
        %v2183 = vld [vmem:[%s7 + $0x8] sm:$0xf]
        %v2184 = vld [vmem:[%s7 + $0xc] sm:$0xf]
        %v2185 = vld [vmem:[%s7 + $0x10] sm:$0xf]
        %v2186 = vld [vmem:[%s7 + $0x14] sm:$0xf]
        %v2187 = vld [vmem:[%s7 + $0x18] sm:$0xf]
        %v2188 = vld [vmem:[%s7 + $0x1c] sm:$0xf]
        %v2189 = vld [vmem:[%s7 + $0x20] sm:$0xf]
        %v2190 = vld [vmem:[%s7 + $0x24] sm:$0xf]
        %v2191 = vld [vmem:[%s7 + $0x28] sm:$0xf]
        %v2192 = vld [vmem:[%s7 + $0x2c] sm:$0xf]
        %v2193 = vld [vmem:[%s7 + $0x30] sm:$0xf]
        %v2194 = vld [vmem:[%s7 + $0x34] sm:$0xf]
        %v2195 = vld [vmem:[%s7 + $0x38] sm:$0xf]
        %v2196 = vld [vmem:[%s7 + $0x3c] sm:$0xf]
        %v2197 = vld [vmem:[%s7 + $0x40] sm:$0xf]
        %v2198 = vld [vmem:[%s7 + $0x44] sm:$0xf]
        %v2199 = vld [vmem:[%s7 + $0x48] sm:$0xf]
        %v2200 = vld [vmem:[%s7 + $0x4c] sm:$0xf]
        %v2201 = vld [vmem:[%s7 + $0x50] sm:$0xf]
        %v2202 = vld [vmem:[%s7 + $0x54] sm:$0xf]
        %v2203 = vld [vmem:[%s7 + $0x58] sm:$0xf]
        %v2204 = vld [vmem:[%s7 + $0x5c] sm:$0xf]
        %v2205 = vld [vmem:[%s7 + $0x60] sm:$0xf]
        %v2206 = vld [vmem:[%s7 + $0x64] sm:$0xf]
        %v2207 = vld [vmem:[%s7 + $0x68] sm:$0xf]
        %v2208 = vld [vmem:[%s7 + $0x6c] sm:$0xf]
        %v2209 = vld [vmem:[%s7 + $0x70] sm:$0xf]
        %v2210 = vld [vmem:[%s7 + $0x74] sm:$0xf]
        %v2211 = vld [vmem:[%s7 + $0x78] sm:$0xf]
        %v2212 = vld [vmem:[%s7 + $0x7c] sm:$0xf]
        %v2245 = vunpack.c.l.b16 %v2181
        %v2246 = vunpack.c.l.b16 %v2182
        %v2247 = vunpack.c.l.b16 %v2183
        %v2248 = vunpack.c.l.b16 %v2184
        %v2249 = vunpack.c.l.b16 %v2185
        %v2250 = vunpack.c.l.b16 %v2186
        %v2251 = vunpack.c.l.b16 %v2187
        %v2252 = vunpack.c.l.b16 %v2188
        %v2253 = vunpack.c.l.b16 %v2189
        %v2254 = vunpack.c.l.b16 %v2190
        %v2255 = vunpack.c.l.b16 %v2191
        %v2256 = vunpack.c.l.b16 %v2192
        %v2257 = vunpack.c.l.b16 %v2193
        %v2258 = vunpack.c.l.b16 %v2194
        %v2259 = vunpack.c.l.b16 %v2195
        %v2260 = vunpack.c.l.b16 %v2196
        %v2261 = vunpack.c.l.b16 %v2197
        %v2262 = vunpack.c.l.b16 %v2198
        %v2263 = vunpack.c.l.b16 %v2199
        %v2264 = vunpack.c.l.b16 %v2200
        %v2265 = vunpack.c.l.b16 %v2201
        %v2266 = vunpack.c.l.b16 %v2202
        %v2267 = vunpack.c.l.b16 %v2203
        %v2268 = vunpack.c.l.b16 %v2204
        %v2269 = vunpack.c.l.b16 %v2205
        %v2270 = vunpack.c.l.b16 %v2206
        %v2271 = vunpack.c.l.b16 %v2207
        %v2272 = vunpack.c.l.b16 %v2208
        %v2273 = vunpack.c.l.b16 %v2209
        %v2274 = vunpack.c.l.b16 %v2210
        %v2275 = vunpack.c.l.b16 %v2211
        %v2276 = vunpack.c.l.b16 %v2212
        %v2277 = vpack.c.b16 %v2246, %v2245
        %v2278 = vpack.c.b16 %v2248, %v2247
        %v2279 = vpack.c.b16 %v2250, %v2249
        %v2280 = vpack.c.b16 %v2252, %v2251
        %v2281 = vpack.c.b16 %v2254, %v2253
        %v2282 = vpack.c.b16 %v2256, %v2255
        %v2283 = vpack.c.b16 %v2258, %v2257
        %v2284 = vpack.c.b16 %v2260, %v2259
        %v2285 = vpack.c.b16 %v2262, %v2261
        %v2286 = vpack.c.b16 %v2264, %v2263
        %v2287 = vpack.c.b16 %v2266, %v2265
        %v2288 = vpack.c.b16 %v2268, %v2267
        %v2289 = vpack.c.b16 %v2270, %v2269
        %v2290 = vpack.c.b16 %v2272, %v2271
        %v2291 = vpack.c.b16 %v2274, %v2273
        %v2292 = vpack.c.b16 %v2276, %v2275
        %2309 = vmatpush.bf16.msra.mxu0 %v2284
        %2310 = vmatpush.bf16.msra.mxu0 %v2283
        %2311 = vmatpush.bf16.msra.mxu0 %v2282
        %2312 = vmatpush.bf16.msra.mxu0 %v2281
        %2313 = vmatpush.bf16.msra.mxu0 %v2280
        %2314 = vmatpush.bf16.msra.mxu0 %v2279
        %2315 = vmatpush.bf16.msra.mxu0 %v2278
        %2316 = vmatpush.bf16.msra.mxu0 %v2277
        %2317 = vmatmul.bf16.gmra.mxu0 %v2173
        %v2318 = vpop.f32.mrf.mxu0
        %v2319 = vadd.f32 %v1410, %v2318
        %v2320 = vpop.f32.mrf.mxu0
        %v2321 = vadd.f32 %v1410, %v2320
        %2322 = vmatmul.bf16.gmra.mxu0 %v2175
        %v2323 = vpop.f32.mrf.mxu0
        %v2324 = vadd.f32 %v1410, %v2323
        %v2325 = vpop.f32.mrf.mxu0
        %v2326 = vadd.f32 %v1410, %v2325
        %2327 = vmatmul.bf16.gmra.mxu0 %v2177
        %v2328 = vpop.f32.mrf.mxu0
        %v2329 = vadd.f32 %v1410, %v2328
        %v2330 = vpop.f32.mrf.mxu0
        %v2331 = vadd.f32 %v1410, %v2330
        %2332 = vmatmul.bf16.gmra.mxu0 %v2179
        %v2333 = vpop.f32.mrf.mxu0
        %v2334 = vadd.f32 %v1410, %v2333
        %v2335 = vpop.f32.mrf.mxu0
        %v2336 = vadd.f32 %v1410, %v2335
        %2337 = vdwg.mxu0
        %2338 = vmatpush.bf16.msra.mxu0 %v2292
        %2339 = vmatpush.bf16.msra.mxu0 %v2291
        %2340 = vmatpush.bf16.msra.mxu0 %v2290
        %2341 = vmatpush.bf16.msra.mxu0 %v2289
        %2342 = vmatpush.bf16.msra.mxu0 %v2288
        %2343 = vmatpush.bf16.msra.mxu0 %v2287
        %2344 = vmatpush.bf16.msra.mxu0 %v2286
        %2345 = vmatpush.bf16.msra.mxu0 %v2285
        %2346 = vmatmul.bf16.gmra.mxu0 %v2174
        %v2347 = vpop.f32.mrf.mxu0
        %v2348 = vadd.f32 %v2319, %v2347
        %v2349 = vpop.f32.mrf.mxu0
        %v2350 = vadd.f32 %v2321, %v2349
        %2351 = vmatmul.bf16.gmra.mxu0 %v2176
        %v2352 = vpop.f32.mrf.mxu0
        %v2353 = vadd.f32 %v2324, %v2352
        %v2354 = vpop.f32.mrf.mxu0
        %v2355 = vadd.f32 %v2326, %v2354
        %2356 = vmatmul.bf16.gmra.mxu0 %v2178
        %v2357 = vpop.f32.mrf.mxu0
        %v2358 = vadd.f32 %v2329, %v2357
        %v2359 = vpop.f32.mrf.mxu0
        %v2360 = vadd.f32 %v2331, %v2359
        %2361 = vmatmul.bf16.gmra.mxu0 %v2180
        %v2362 = vpop.f32.mrf.mxu0
        %v2363 = vadd.f32 %v2334, %v2362
        %v2364 = vpop.f32.mrf.mxu0
        %v2365 = vadd.f32 %v2336, %v2364
        %2366 = vdwg.mxu0
        %v2367 = vmax.f32 %v2348, 0.0
        %v2368 = vmax.f32 %v2350, 0.0
        %v2369 = vmax.f32 %v2353, 0.0
        %v2370 = vmax.f32 %v2355, 0.0
        %v2371 = vmax.f32 %v2358, 0.0
        %v2372 = vmax.f32 %v2360, 0.0
        %v2373 = vmax.f32 %v2363, 0.0
        %v2374 = vmax.f32 %v2365, 0.0
        %2375 = vst.msk [vmem:[%s349 + $0x80] sm:$0xff] %vm1574, %v2367
        %2376 = vst.msk [vmem:[%s349 + $0x88] sm:$0xff] %vm1574, %v2368
        %2377 = vst.msk [vmem:[%s349 + $0x90] sm:$0xff] %vm1574, %v2369
        %2378 = vst.msk [vmem:[%s349 + $0x98] sm:$0xff] %vm1574, %v2370
        %2379 = vst.msk [vmem:[%s349 + $0xa0] sm:$0xff] %vm1574, %v2371
        %2380 = vst.msk [vmem:[%s349 + $0xa8] sm:$0xff] %vm1574, %v2372
        %2381 = vst.msk [vmem:[%s349 + $0xb0] sm:$0xff] %vm1574, %v2373
        %2382 = vst.msk [vmem:[%s349 + $0xb8] sm:$0xff] %vm1574, %v2374
        %v2383 = vld [vmem:[%s5] sm:$0xff]
        %v2384 = vld [vmem:[%s5 + $0x8] sm:$0xff]
        %v2385 = vld [vmem:[%s5 + $0x10] sm:$0xff]
        %v2386 = vld [vmem:[%s5 + $0x18] sm:$0xff]
        %v2387 = vld [vmem:[%s5 + $0x20] sm:$0xff]
        %v2388 = vld [vmem:[%s5 + $0x28] sm:$0xff]
        %v2389 = vld [vmem:[%s5 + $0x30] sm:$0xff]
        %v2390 = vld [vmem:[%s5 + $0x38] sm:$0xff]
        %v2391 = vld [vmem:[%s5 + $0x40] sm:$0xff]
        %v2392 = vld [vmem:[%s5 + $0x48] sm:$0xff]
        %v2393 = vld [vmem:[%s5 + $0x50] sm:$0xff]
        %v2394 = vld [vmem:[%s5 + $0x58] sm:$0xff]
        %v2395 = vld [vmem:[%s5 + $0x60] sm:$0xff]
        %v2396 = vld [vmem:[%s5 + $0x68] sm:$0xff]
        %v2397 = vld [vmem:[%s5 + $0x70] sm:$0xff]
        %v2398 = vld [vmem:[%s5 + $0x78] sm:$0xff]
        %v2399 = vunpack.c.h.b16 %v1155
        %v2400 = vunpack.c.h.b16 %v1157
        %v2401 = vunpack.c.h.b16 %v1159
        %v2402 = vunpack.c.h.b16 %v1161
        %v2403 = vunpack.c.h.b16 %v1163
        %v2404 = vunpack.c.h.b16 %v1165
        %v2405 = vunpack.c.h.b16 %v1167
        %v2406 = vunpack.c.h.b16 %v1169
        %v2407 = vpack.c.b16 %v2400, %v2399
        %v2408 = vpack.c.b16 %v2402, %v2401
        %v2409 = vpack.c.b16 %v2404, %v2403
        %v2410 = vpack.c.b16 %v2406, %v2405
        %v2431 = vunpack.c.l.b16 %v2383
        %v2432 = vunpack.c.h.b16 %v2383
        %v2433 = vunpack.c.l.b16 %v2384
        %v2434 = vunpack.c.h.b16 %v2384
        %v2435 = vunpack.c.l.b16 %v2385
        %v2436 = vunpack.c.h.b16 %v2385
        %v2437 = vunpack.c.l.b16 %v2386
        %v2438 = vunpack.c.h.b16 %v2386
        %v2439 = vunpack.c.l.b16 %v2387
        %v2440 = vunpack.c.h.b16 %v2387
        %v2441 = vunpack.c.l.b16 %v2388
        %v2442 = vunpack.c.h.b16 %v2388
        %v2443 = vunpack.c.l.b16 %v2389
        %v2444 = vunpack.c.h.b16 %v2389
        %v2445 = vunpack.c.l.b16 %v2390
        %v2446 = vunpack.c.h.b16 %v2390
        %v2447 = vunpack.c.l.b16 %v2391
        %v2448 = vunpack.c.h.b16 %v2391
        %v2449 = vunpack.c.l.b16 %v2392
        %v2450 = vunpack.c.h.b16 %v2392
        %v2451 = vunpack.c.l.b16 %v2393
        %v2452 = vunpack.c.h.b16 %v2393
        %v2453 = vunpack.c.l.b16 %v2394
        %v2454 = vunpack.c.h.b16 %v2394
        %v2455 = vunpack.c.l.b16 %v2395
        %v2456 = vunpack.c.h.b16 %v2395
        %v2457 = vunpack.c.l.b16 %v2396
        %v2458 = vunpack.c.h.b16 %v2396
        %v2459 = vunpack.c.l.b16 %v2397
        %v2460 = vunpack.c.h.b16 %v2397
        %v2461 = vunpack.c.l.b16 %v2398
        %v2462 = vunpack.c.h.b16 %v2398
        %v2463 = vpack.c.b16 %v2433, %v2431
        %v2464 = vpack.c.b16 %v2434, %v2432
        %v2465 = vpack.c.b16 %v2437, %v2435
        %v2466 = vpack.c.b16 %v2438, %v2436
        %v2467 = vpack.c.b16 %v2441, %v2439
        %v2468 = vpack.c.b16 %v2442, %v2440
        %v2469 = vpack.c.b16 %v2445, %v2443
        %v2470 = vpack.c.b16 %v2446, %v2444
        %v2471 = vpack.c.b16 %v2449, %v2447
        %v2472 = vpack.c.b16 %v2450, %v2448
        %v2473 = vpack.c.b16 %v2453, %v2451
        %v2474 = vpack.c.b16 %v2454, %v2452
        %v2475 = vpack.c.b16 %v2457, %v2455
        %v2476 = vpack.c.b16 %v2458, %v2456
        %v2477 = vpack.c.b16 %v2461, %v2459
        %v2478 = vpack.c.b16 %v2462, %v2460
        %2495 = vmatpush.bf16.msra.mxu0 %v2477
        %2496 = vmatpush.bf16.msra.mxu0 %v2475
        %2497 = vmatpush.bf16.msra.mxu0 %v2473
        %2498 = vmatpush.bf16.msra.mxu0 %v2471
        %2499 = vmatpush.bf16.msra.mxu0 %v2469
        %2500 = vmatpush.bf16.msra.mxu0 %v2467
        %2501 = vmatpush.bf16.msra.mxu0 %v2465
        %2502 = vmatpush.bf16.msra.mxu0 %v2463
        %2503 = vmatmul.bf16.gmra.mxu0 %v2407
        %v2504 = vpop.f32.mrf.mxu0
        %v2505 = vadd.f32 %v1187, %v2504
        %v2506 = vpop.f32.mrf.mxu0
        %v2507 = vadd.f32 %v1187, %v2506
        %2508 = vmatmul.bf16.gmra.mxu0 %v2408
        %v2509 = vpop.f32.mrf.mxu0
        %v2510 = vadd.f32 %v1187, %v2509
        %v2511 = vpop.f32.mrf.mxu0
        %v2512 = vadd.f32 %v1187, %v2511
        %2513 = vmatmul.bf16.gmra.mxu0 %v2409
        %v2514 = vpop.f32.mrf.mxu0
        %v2515 = vadd.f32 %v1187, %v2514
        %v2516 = vpop.f32.mrf.mxu0
        %v2517 = vadd.f32 %v1187, %v2516
        %2518 = vmatmul.bf16.gmra.mxu0 %v2410
        %v2519 = vpop.f32.mrf.mxu0
        %v2520 = vadd.f32 %v1187, %v2519
        %v2521 = vpop.f32.mrf.mxu0
        %v2522 = vadd.f32 %v1187, %v2521
        %2523 = vdwg.mxu0
        %2524 = vmatpush.bf16.msra.mxu0 %v2478
        %2525 = vmatpush.bf16.msra.mxu0 %v2476
        %2526 = vmatpush.bf16.msra.mxu0 %v2474
        %2527 = vmatpush.bf16.msra.mxu0 %v2472
        %2528 = vmatpush.bf16.msra.mxu0 %v2470
        %2529 = vmatpush.bf16.msra.mxu0 %v2468
        %2530 = vmatpush.bf16.msra.mxu0 %v2466
        %2531 = vmatpush.bf16.msra.mxu0 %v2464
        %2532 = vmatmul.bf16.gmra.mxu0 %v2407
        %v2533 = vpop.f32.mrf.mxu0
        %v2534 = vadd.f32 %v1188, %v2533
        %v2535 = vpop.f32.mrf.mxu0
        %v2536 = vadd.f32 %v1188, %v2535
        %2537 = vmatmul.bf16.gmra.mxu0 %v2408
        %v2538 = vpop.f32.mrf.mxu0
        %v2539 = vadd.f32 %v1188, %v2538
        %v2540 = vpop.f32.mrf.mxu0
        %v2541 = vadd.f32 %v1188, %v2540
        %2542 = vmatmul.bf16.gmra.mxu0 %v2409
        %v2543 = vpop.f32.mrf.mxu0
        %v2544 = vadd.f32 %v1188, %v2543
        %v2545 = vpop.f32.mrf.mxu0
        %v2546 = vadd.f32 %v1188, %v2545
        %2547 = vmatmul.bf16.gmra.mxu0 %v2410
        %v2548 = vpop.f32.mrf.mxu0
        %v2549 = vadd.f32 %v1188, %v2548
        %v2550 = vpop.f32.mrf.mxu0
        %v2551 = vadd.f32 %v1188, %v2550
        %2552 = vdwg.mxu0
        %v2553 = vmax.f32 %v2505, 0.0
        %v2554 = vmax.f32 %v2534, 0.0
        %v2555 = vmax.f32 %v2507, 0.0
        %v2556 = vmax.f32 %v2536, 0.0
        %v2557 = vmax.f32 %v2510, 0.0
        %v2558 = vmax.f32 %v2539, 0.0
        %v2559 = vmax.f32 %v2512, 0.0
        %v2560 = vmax.f32 %v2541, 0.0
        %v2561 = vmax.f32 %v2515, 0.0
        %v2562 = vmax.f32 %v2544, 0.0
        %v2563 = vmax.f32 %v2517, 0.0
        %v2564 = vmax.f32 %v2546, 0.0
        %v2565 = vmax.f32 %v2520, 0.0
        %v2566 = vmax.f32 %v2549, 0.0
        %v2567 = vmax.f32 %v2522, 0.0
        %v2568 = vmax.f32 %v2551, 0.0
        %v2569 = vpack.c.bf16 %v2555, %v2553
        %v2570 = vpack.c.bf16 %v2556, %v2554
        %v2571 = vpack.c.bf16 %v2559, %v2557
        %v2572 = vpack.c.bf16 %v2560, %v2558
        %v2573 = vpack.c.bf16 %v2563, %v2561
        %v2574 = vpack.c.bf16 %v2564, %v2562
        %v2575 = vpack.c.bf16 %v2567, %v2565
        %v2576 = vpack.c.bf16 %v2568, %v2566
        %v2577 = vld [vmem:[%s7] sm:$0xf]
        %v2578 = vld [vmem:[%s7 + $0x4] sm:$0xf]
        %v2579 = vld [vmem:[%s7 + $0x8] sm:$0xf]
        %v2580 = vld [vmem:[%s7 + $0xc] sm:$0xf]
        %v2581 = vld [vmem:[%s7 + $0x10] sm:$0xf]
        %v2582 = vld [vmem:[%s7 + $0x14] sm:$0xf]
        %v2583 = vld [vmem:[%s7 + $0x18] sm:$0xf]
        %v2584 = vld [vmem:[%s7 + $0x1c] sm:$0xf]
        %v2585 = vld [vmem:[%s7 + $0x20] sm:$0xf]
        %v2586 = vld [vmem:[%s7 + $0x24] sm:$0xf]
        %v2587 = vld [vmem:[%s7 + $0x28] sm:$0xf]
        %v2588 = vld [vmem:[%s7 + $0x2c] sm:$0xf]
        %v2589 = vld [vmem:[%s7 + $0x30] sm:$0xf]
        %v2590 = vld [vmem:[%s7 + $0x34] sm:$0xf]
        %v2591 = vld [vmem:[%s7 + $0x38] sm:$0xf]
        %v2592 = vld [vmem:[%s7 + $0x3c] sm:$0xf]
        %v2593 = vld [vmem:[%s7 + $0x40] sm:$0xf]
        %v2594 = vld [vmem:[%s7 + $0x44] sm:$0xf]
        %v2595 = vld [vmem:[%s7 + $0x48] sm:$0xf]
        %v2596 = vld [vmem:[%s7 + $0x4c] sm:$0xf]
        %v2597 = vld [vmem:[%s7 + $0x50] sm:$0xf]
        %v2598 = vld [vmem:[%s7 + $0x54] sm:$0xf]
        %v2599 = vld [vmem:[%s7 + $0x58] sm:$0xf]
        %v2600 = vld [vmem:[%s7 + $0x5c] sm:$0xf]
        %v2601 = vld [vmem:[%s7 + $0x60] sm:$0xf]
        %v2602 = vld [vmem:[%s7 + $0x64] sm:$0xf]
        %v2603 = vld [vmem:[%s7 + $0x68] sm:$0xf]
        %v2604 = vld [vmem:[%s7 + $0x6c] sm:$0xf]
        %v2605 = vld [vmem:[%s7 + $0x70] sm:$0xf]
        %v2606 = vld [vmem:[%s7 + $0x74] sm:$0xf]
        %v2607 = vld [vmem:[%s7 + $0x78] sm:$0xf]
        %v2608 = vld [vmem:[%s7 + $0x7c] sm:$0xf]
        %v2641 = vunpack.c.l.b16 %v2577
        %v2642 = vunpack.c.l.b16 %v2578
        %v2643 = vunpack.c.l.b16 %v2579
        %v2644 = vunpack.c.l.b16 %v2580
        %v2645 = vunpack.c.l.b16 %v2581
        %v2646 = vunpack.c.l.b16 %v2582
        %v2647 = vunpack.c.l.b16 %v2583
        %v2648 = vunpack.c.l.b16 %v2584
        %v2649 = vunpack.c.l.b16 %v2585
        %v2650 = vunpack.c.l.b16 %v2586
        %v2651 = vunpack.c.l.b16 %v2587
        %v2652 = vunpack.c.l.b16 %v2588
        %v2653 = vunpack.c.l.b16 %v2589
        %v2654 = vunpack.c.l.b16 %v2590
        %v2655 = vunpack.c.l.b16 %v2591
        %v2656 = vunpack.c.l.b16 %v2592
        %v2657 = vunpack.c.l.b16 %v2593
        %v2658 = vunpack.c.l.b16 %v2594
        %v2659 = vunpack.c.l.b16 %v2595
        %v2660 = vunpack.c.l.b16 %v2596
        %v2661 = vunpack.c.l.b16 %v2597
        %v2662 = vunpack.c.l.b16 %v2598
        %v2663 = vunpack.c.l.b16 %v2599
        %v2664 = vunpack.c.l.b16 %v2600
        %v2665 = vunpack.c.l.b16 %v2601
        %v2666 = vunpack.c.l.b16 %v2602
        %v2667 = vunpack.c.l.b16 %v2603
        %v2668 = vunpack.c.l.b16 %v2604
        %v2669 = vunpack.c.l.b16 %v2605
        %v2670 = vunpack.c.l.b16 %v2606
        %v2671 = vunpack.c.l.b16 %v2607
        %v2672 = vunpack.c.l.b16 %v2608
        %v2673 = vpack.c.b16 %v2642, %v2641
        %v2674 = vpack.c.b16 %v2644, %v2643
        %v2675 = vpack.c.b16 %v2646, %v2645
        %v2676 = vpack.c.b16 %v2648, %v2647
        %v2677 = vpack.c.b16 %v2650, %v2649
        %v2678 = vpack.c.b16 %v2652, %v2651
        %v2679 = vpack.c.b16 %v2654, %v2653
        %v2680 = vpack.c.b16 %v2656, %v2655
        %v2681 = vpack.c.b16 %v2658, %v2657
        %v2682 = vpack.c.b16 %v2660, %v2659
        %v2683 = vpack.c.b16 %v2662, %v2661
        %v2684 = vpack.c.b16 %v2664, %v2663
        %v2685 = vpack.c.b16 %v2666, %v2665
        %v2686 = vpack.c.b16 %v2668, %v2667
        %v2687 = vpack.c.b16 %v2670, %v2669
        %v2688 = vpack.c.b16 %v2672, %v2671
        %2705 = vmatpush.bf16.msra.mxu0 %v2680
        %2706 = vmatpush.bf16.msra.mxu0 %v2679
        %2707 = vmatpush.bf16.msra.mxu0 %v2678
        %2708 = vmatpush.bf16.msra.mxu0 %v2677
        %2709 = vmatpush.bf16.msra.mxu0 %v2676
        %2710 = vmatpush.bf16.msra.mxu0 %v2675
        %2711 = vmatpush.bf16.msra.mxu0 %v2674
        %2712 = vmatpush.bf16.msra.mxu0 %v2673
        %2713 = vmatmul.bf16.gmra.mxu0 %v2569
        %v2714 = vpop.f32.mrf.mxu0
        %v2715 = vadd.f32 %v1410, %v2714
        %v2716 = vpop.f32.mrf.mxu0
        %v2717 = vadd.f32 %v1410, %v2716
        %2718 = vmatmul.bf16.gmra.mxu0 %v2571
        %v2719 = vpop.f32.mrf.mxu0
        %v2720 = vadd.f32 %v1410, %v2719
        %v2721 = vpop.f32.mrf.mxu0
        %v2722 = vadd.f32 %v1410, %v2721
        %2723 = vmatmul.bf16.gmra.mxu0 %v2573
        %v2724 = vpop.f32.mrf.mxu0
        %v2725 = vadd.f32 %v1410, %v2724
        %v2726 = vpop.f32.mrf.mxu0
        %v2727 = vadd.f32 %v1410, %v2726
        %2728 = vmatmul.bf16.gmra.mxu0 %v2575
        %v2729 = vpop.f32.mrf.mxu0
        %v2730 = vadd.f32 %v1410, %v2729
        %v2731 = vpop.f32.mrf.mxu0
        %v2732 = vadd.f32 %v1410, %v2731
        %2733 = vdwg.mxu0
        %2734 = vmatpush.bf16.msra.mxu0 %v2688
        %2735 = vmatpush.bf16.msra.mxu0 %v2687
        %2736 = vmatpush.bf16.msra.mxu0 %v2686
        %2737 = vmatpush.bf16.msra.mxu0 %v2685
        %2738 = vmatpush.bf16.msra.mxu0 %v2684
        %2739 = vmatpush.bf16.msra.mxu0 %v2683
        %2740 = vmatpush.bf16.msra.mxu0 %v2682
        %2741 = vmatpush.bf16.msra.mxu0 %v2681
        %2742 = vmatmul.bf16.gmra.mxu0 %v2570
        %v2743 = vpop.f32.mrf.mxu0
        %v2744 = vadd.f32 %v2715, %v2743
        %v2745 = vpop.f32.mrf.mxu0
        %v2746 = vadd.f32 %v2717, %v2745
        %2747 = vmatmul.bf16.gmra.mxu0 %v2572
        %v2748 = vpop.f32.mrf.mxu0
        %v2749 = vadd.f32 %v2720, %v2748
        %v2750 = vpop.f32.mrf.mxu0
        %v2751 = vadd.f32 %v2722, %v2750
        %2752 = vmatmul.bf16.gmra.mxu0 %v2574
        %v2753 = vpop.f32.mrf.mxu0
        %v2754 = vadd.f32 %v2725, %v2753
        %v2755 = vpop.f32.mrf.mxu0
        %v2756 = vadd.f32 %v2727, %v2755
        %2757 = vmatmul.bf16.gmra.mxu0 %v2576
        %v2758 = vpop.f32.mrf.mxu0
        %v2759 = vadd.f32 %v2730, %v2758
        %v2760 = vpop.f32.mrf.mxu0
        %v2761 = vadd.f32 %v2732, %v2760
        %2762 = vdwg.mxu0
        %v2763 = vmax.f32 %v2744, 0.0
        %v2764 = vmax.f32 %v2746, 0.0
        %v2765 = vmax.f32 %v2749, 0.0
        %v2766 = vmax.f32 %v2751, 0.0
        %v2767 = vmax.f32 %v2754, 0.0
        %v2768 = vmax.f32 %v2756, 0.0
        %v2769 = vmax.f32 %v2759, 0.0
        %v2770 = vmax.f32 %v2761, 0.0
        %2771 = vst.msk [vmem:[%s349 + $0xc0] sm:$0xff] %vm1574, %v2763
        %2772 = vst.msk [vmem:[%s349 + $0xc8] sm:$0xff] %vm1574, %v2764
        %2773 = vst.msk [vmem:[%s349 + $0xd0] sm:$0xff] %vm1574, %v2765
        %2774 = vst.msk [vmem:[%s349 + $0xd8] sm:$0xff] %vm1574, %v2766
        %2775 = vst.msk [vmem:[%s349 + $0xe0] sm:$0xff] %vm1574, %v2767
        %2776 = vst.msk [vmem:[%s349 + $0xe8] sm:$0xff] %vm1574, %v2768
        %2777 = vst.msk [vmem:[%s349 + $0xf0] sm:$0xff] %vm1574, %v2769
        %2778 = vst.msk [vmem:[%s349 + $0xf8] sm:$0xff] %vm1574, %v2770
        %s2779 = smul.u32 32, %s21
        %p2780 = scmp.lt.s32.totalorder %s2779, 63
        %s2781 = scalar_select %p2780, %s2779, 63
        %s2782 = smul.addr %s2781, 8
        %s2783 = scalar_lea.vmem %s9, %s2782
        // Predicated region
        $region61: #{vgg_renderer_forward.1} parent=55 // pred_check
          %p2784 = pneg %p233
        $region62: #{vgg_renderer_forward.1} parent=55 // pred_check_branch
          %2786 = sbr.rel (%p2784) target = $region64
        $region63: #{vgg_renderer_forward.1} parent=55 // pred_region
          %s2787 = smul.u32 32, %s21
        $region64: #{vgg_renderer_forward.1} parent=55 // pred_fallthru
          _
      $region56: #{vgg_renderer_forward.1} parent=5 // pred_fallthru
        _
      %p2788 = scmp.le.s32.totalorder 2, %s16
      // Predicated region
      $region65: #{vgg_renderer_forward.1} parent=5 // pred_check
        %p2789 = pneg %p2788
      $region66: #{vgg_renderer_forward.1} parent=5 // pred_check_branch
        %2791 = sbr.rel (%p2789) target = $region68
      $region67: #{vgg_renderer_forward.1} parent=5 // pred_region
        %s2792 = ssub.s32 %s16, 2
        // Predicated region
        $region69: #{vgg_renderer_forward.1} parent=67 // pred_check
          %p2793 = pneg %p239
        $region70: #{vgg_renderer_forward.1} parent=67 // pred_check_branch
          %2795 = sbr.rel (%p2793) target = $region72
        $region71: #{vgg_renderer_forward.1} parent=67 // pred_region
          %s2796 = smul.u32 32, %s22
          %p2797 = scmp.lt.s32.totalorder %s2796, 63
          %s2798 = scalar_select %p2797, %s2796, 63
          %s2799 = smul.addr %s2798, 8
          %s2800 = scalar_lea.vmem %s9, %s2799
        $region72: #{vgg_renderer_forward.1} parent=67 // pred_fallthru
          _
      $region68: #{vgg_renderer_forward.1} parent=5 // pred_fallthru
        _
    $region6: #{vgg_renderer_forward.1} parent=1 // loop_footer
      %s20 = sadd.s32 1, %s16
    $region7: #{vgg_renderer_forward.1} parent=1 // loop_footer_branch
      %15 = sbr.rel target = $region3
    $region8: #{vgg_renderer_forward.1} parent=1 // loop_exit
      _
    %2801 = vsyncpa [#allocation3], 1
    %s2802 = scalar_lea.sflag [#allocation3], 1
    %2803 = vsyncpa %s2802, 1

</llo_original>
